<compile_context>
chip_gen: v7x
topology: tpu7x:2x2x1
jax: 0.10.0
libtpu: 0.0.40
codegen_flags: <defaults>
</compile_context>

<pallas_src>
import functools
import math

import jax
import jax.numpy as jnp
import numpy as np
from jax import lax
from jax.experimental import pallas as pl
from jax.experimental.pallas import tpu as pltpu


# ----------------------------------------------------------------------------
# Fused kernel: all heads + concat + output projection, one batch per step
# ----------------------------------------------------------------------------
def _mha_fused_kernel(mask_ref, q_ref, k_ref, v_ref,
                      wq_ref, wk_ref, wv_ref, wp_ref, bp_ref, o_ref,
                      *, num_heads, head_size, head_out):
    q = q_ref[0]              # (Tq, E)
    k = k_ref[0]              # (Tk, E)
    v = v_ref[0]              # (Tk, E)
    fill = mask_ref[0]        # (Tq, Tk); 1.0 => replace score with 1e-9

    wq = wq_ref[...]          # (E, H*S)   stacked per-head query weights
    wk = wk_ref[...]          # (E, H*S)
    wv = wv_ref[...]          # (E, H*Do)

    # One wide matmul per projection for ALL heads at once.
    Q = jnp.dot(q, wq, preferred_element_type=jnp.float32)   # (Tq, H*S)
    K = jnp.dot(k, wk, preferred_element_type=jnp.float32)   # (Tk, H*S)
    V = jnp.dot(v, wv, preferred_element_type=jnp.float32)   # (Tk, H*Do)

    scale = head_size ** -0.5
    # Contract last axis of both operands: Q_h (Tq,S) . K_h (Tk,S) -> (Tq,Tk)
    dn = (((1,), (1,)), ((), ()))

    ctxs = []
    for h in range(num_heads):                 # static unrolled loop, H small
        Qh = Q[:, h * head_size:(h + 1) * head_size]
        Kh = K[:, h * head_size:(h + 1) * head_size]
        Vh = V[:, h * head_out:(h + 1) * head_out]

        s = lax.dot_general(Qh, Kh, dn, preferred_element_type=jnp.float32)

        # quirky mask: fill with 1e-9 BEFORE scaling (matches PyTorch module)
        s = jnp.where(fill > 0.0, 1e-9, s)
        s = s * scale

        # softmax over keys
        m = jnp.max(s, axis=-1, keepdims=True)
        e = jnp.exp(s - m)
        w = e * pl.reciprocal(jnp.sum(e, axis=-1, keepdims=True), approx=False)

        ctxs.append(jnp.dot(w, Vh, preferred_element_type=jnp.float32))

    cat = jnp.concatenate(ctxs, axis=-1)                      # (Tq, H*Do)

    # fused output projection (Linear with bias) -> lane-dense E-wide store
    y = jnp.dot(cat, wp_ref[...], preferred_element_type=jnp.float32)
    o_ref[0] = y + bp_ref[...]                                # bias (1, E)


def multi_head_attention(q, k, v, pad_mask, params):
    """q, k, v: (B, T, E) f32; pad_mask: (B, T) f32 of 0/1."""
    tril, wq, wk, wv, wp, bp = params
    B, Tq, E = q.shape
    _, Tk, _ = k.shape
    H, _, S = wq.shape
    Do = wv.shape[-1]

    # Stack per-head weights along the output (lane) dimension:
    #   (H, E, S) -> (E, H, S) -> (E, H*S)   so column block h == head h.
    wq_all = jnp.transpose(wq, (1, 0, 2)).reshape(E, H * S)
    wk_all = jnp.transpose(wk, (1, 0, 2)).reshape(E, H * S)
    wv_all = jnp.transpose(wv, (1, 0, 2)).reshape(E, H * Do)
    bp2 = bp.reshape(1, E)

    # Pre-combined fill mask (tril==0 OR pad==1), per batch: (B, Tq, Tk).
    fill = jnp.maximum(
        (tril[None, :Tq, :Tk] == 0.0).astype(jnp.float32),
        (pad_mask[:, :, None] == 1.0).astype(jnp.float32),
    )

    kernel = functools.partial(_mha_fused_kernel,
                               num_heads=H, head_size=S, head_out=Do)

    return pl.pallas_call(
        kernel,
        out_shape=jax.ShapeDtypeStruct((B, Tq, E), jnp.float32),
        grid_spec=pltpu.PrefetchScalarGridSpec(
            num_scalar_prefetch=0,
            grid=(B,),
            in_specs=[
                pl.BlockSpec((1, Tq, Tk), lambda b: (b, 0, 0)),     # fill mask
                pl.BlockSpec((1, Tq, E), lambda b: (b, 0, 0)),      # q
                pl.BlockSpec((1, Tk, E), lambda b: (b, 0, 0)),      # k
                pl.BlockSpec((1, Tk, E), lambda b: (b, 0, 0)),      # v
                pl.BlockSpec((E, H * S), lambda b: (0, 0)),         # Wq stacked
                pl.BlockSpec((E, H * S), lambda b: (0, 0)),         # Wk stacked
                pl.BlockSpec((E, H * Do), lambda b: (0, 0)),        # Wv stacked
                pl.BlockSpec((H * Do, E), lambda b: (0, 0)),        # Wp
                pl.BlockSpec((1, E), lambda b: (0, 0)),             # bias
            ],
            out_specs=pl.BlockSpec((1, Tq, E), lambda b: (b, 0, 0)),
        ),
        compiler_params=pltpu.CompilerParams(
            dimension_semantics=("parallel",)),   # one batch per TC on v7x
    )(fill, q, k, v, wq_all, wk_all, wv_all, wp, bp2)


# ----------------------------------------------------------------------------
# Pure-JAX reference (mirrors the PyTorch module exactly) for verification
# ----------------------------------------------------------------------------
def reference(q, k, v, pad_mask, params, head_size):
    tril, wq, wk, wv, wp, bp = params
    H = wq.shape[0]
    outs = []
    for h in range(H):
        Q = q @ wq[h]
        K = k @ wk[h]
        V = v @ wv[h]
        s = jnp.einsum("btd,bsd->bts", Q, K)
        s = jnp.where(tril[None] == 0.0, 1e-9, s)
        s = jnp.where(pad_mask[:, :, None] == 1.0, 1e-9, s)
        w = jax.nn.softmax(s * head_size ** -0.5, axis=-1)
        outs.append(jnp.einsum("bts,bsd->btd", w, V))
    o = jnp.concatenate(outs, axis=-1)
    return o @ wp + bp


if __name__ == "__main__":
    # Small shapes consistent with the module
    B, T, E = 2, 8, 32          # batch, context_length, embedding_dimension
    H, S, Do = 4, 16, 16        # num_heads, head_size, head_output_dimension

    key = jax.random.PRNGKey(0)
    ks = jax.random.split(key, 9)

    q = jax.random.normal(ks[0], (B, T, E), jnp.float32)
    k = jax.random.normal(ks[1], (B, T, E), jnp.float32)
    v = jax.random.normal(ks[2], (B, T, E), jnp.float32)
    pad_mask = jax.random.bernoulli(ks[3], 0.3, (B, T)).astype(jnp.float32)

    # deterministic synthetic parameters (nn.Linear weights, stored transposed
    # relative to nn.Linear.weight, i.e. (in_dim, out_dim))
    scale = 1.0 / math.sqrt(E)
    wq = jax.random.uniform(ks[4], (H, E, S), jnp.float32, -scale, scale)
    wk = jax.random.uniform(ks[5], (H, E, S), jnp.float32, -scale, scale)
    wv = jax.random.uniform(ks[6], (H, E, Do), jnp.float32, -scale, scale)
    pscale = 1.0 / math.sqrt(H * Do)
    wp = jax.random.uniform(ks[7], (H * Do, E), jnp.float32, -pscale, pscale)
    bp = jax.random.uniform(ks[8], (E,), jnp.float32, -pscale, pscale)

    # tril(ones, diagonal=1) buffer, exactly as in the module
    tril = jnp.tril(jnp.ones((T, T), jnp.float32), k=1)

    params = (tril, wq, wk, wv, wp, bp)

    out = multi_head_attention(q, k, v, pad_mask, params)
    out = jax.block_until_ready(out)

    ref = reference(q, k, v, pad_mask, params, head_size=S)
    np.testing.assert_allclose(np.asarray(out), np.asarray(ref),
                               rtol=1e-5, atol=1e-5)
    print("KERNEL_OK")
</pallas_src>

<mosaic_0001>
module attributes {stable_mosaic.version = 11 : i64} {
  func.func @_mha_fused_kernel(%arg0: i32, %arg1: memref<1x8x8xf32, #tpu.memory_space<vmem>>, %arg2: memref<1x8x32xf32, #tpu.memory_space<vmem>>, %arg3: memref<1x8x32xf32, #tpu.memory_space<vmem>>, %arg4: memref<1x8x32xf32, #tpu.memory_space<vmem>>, %arg5: memref<32x64xf32, #tpu.memory_space<vmem>>, %arg6: memref<32x64xf32, #tpu.memory_space<vmem>>, %arg7: memref<32x64xf32, #tpu.memory_space<vmem>>, %arg8: memref<64x32xf32, #tpu.memory_space<vmem>>, %arg9: memref<1x32xf32, #tpu.memory_space<vmem>>, %arg10: memref<1x8x32xf32, #tpu.memory_space<vmem>>) attributes {dimension_semantics = [#tpu.dimension_semantics<parallel>], iteration_bounds = array<i64: 2>, scalar_prefetch = 0 : i64, scratch_operands = 0 : i64, tpu.core_type = #tpu.core_type<tc>, window_params = [{transform_indices = @transform_0, window_bounds = array<i64: 1, 8, 8>}, {transform_indices = @transform_1, window_bounds = array<i64: 1, 8, 32>}, {transform_indices = @transform_2, window_bounds = array<i64: 1, 8, 32>}, {transform_indices = @transform_3, window_bounds = array<i64: 1, 8, 32>}, {pipeline_mode = #tpu.pipeline_mode<synchronous>, transform_indices = @transform_4, window_bounds = array<i64: 32, 64>}, {pipeline_mode = #tpu.pipeline_mode<synchronous>, transform_indices = @transform_5, window_bounds = array<i64: 32, 64>}, {pipeline_mode = #tpu.pipeline_mode<synchronous>, transform_indices = @transform_6, window_bounds = array<i64: 32, 64>}, {pipeline_mode = #tpu.pipeline_mode<synchronous>, transform_indices = @transform_7, window_bounds = array<i64: 64, 32>}, {pipeline_mode = #tpu.pipeline_mode<synchronous>, transform_indices = @transform_8, window_bounds = array<i64: 1, 32>}, {transform_indices = @transform_9, window_bounds = array<i64: 1, 8, 32>}]} {
    %c0 = arith.constant 0 : index
    %c0_0 = arith.constant 0 : index
    %c0_1 = arith.constant 0 : index
    %0 = vector.load %arg2[%c0, %c0_0, %c0_1] : memref<1x8x32xf32, #tpu.memory_space<vmem>>, vector<1x8x32xf32>
    %1 = vector.shape_cast %0 : vector<1x8x32xf32> to vector<8x32xf32>
    %c0_2 = arith.constant 0 : index
    %c0_3 = arith.constant 0 : index
    %c0_4 = arith.constant 0 : index
    %2 = vector.load %arg3[%c0_2, %c0_3, %c0_4] : memref<1x8x32xf32, #tpu.memory_space<vmem>>, vector<1x8x32xf32>
    %3 = vector.shape_cast %2 : vector<1x8x32xf32> to vector<8x32xf32>
    %c0_5 = arith.constant 0 : index
    %c0_6 = arith.constant 0 : index
    %c0_7 = arith.constant 0 : index
    %4 = vector.load %arg4[%c0_5, %c0_6, %c0_7] : memref<1x8x32xf32, #tpu.memory_space<vmem>>, vector<1x8x32xf32>
    %5 = vector.shape_cast %4 : vector<1x8x32xf32> to vector<8x32xf32>
    %c0_8 = arith.constant 0 : index
    %c0_9 = arith.constant 0 : index
    %c0_10 = arith.constant 0 : index
    %6 = vector.load %arg1[%c0_8, %c0_9, %c0_10] : memref<1x8x8xf32, #tpu.memory_space<vmem>>, vector<1x8x8xf32>
    %7 = vector.shape_cast %6 : vector<1x8x8xf32> to vector<8x8xf32>
    %c0_11 = arith.constant 0 : index
    %c0_12 = arith.constant 0 : index
    %8 = vector.load %arg5[%c0_11, %c0_12] : memref<32x64xf32, #tpu.memory_space<vmem>>, vector<32x64xf32>
    %c0_13 = arith.constant 0 : index
    %c0_14 = arith.constant 0 : index
    %9 = vector.load %arg6[%c0_13, %c0_14] : memref<32x64xf32, #tpu.memory_space<vmem>>, vector<32x64xf32>
    %c0_15 = arith.constant 0 : index
    %c0_16 = arith.constant 0 : index
    %10 = vector.load %arg7[%c0_15, %c0_16] : memref<32x64xf32, #tpu.memory_space<vmem>>, vector<32x64xf32>
    %cst = arith.constant dense<0.000000e+00> : vector<8x64xf32>
    %11 = tpu.matmul %1, %8, %cst {dimension_numbers = #tpu.dot_dimension_numbers<[1], [0], [0], [1], [0, 0, 1, 1], [], []>} : vector<8x32xf32>, vector<32x64xf32>, vector<8x64xf32> -> vector<8x64xf32>
    %cst_17 = arith.constant dense<0.000000e+00> : vector<8x64xf32>
    %12 = tpu.matmul %3, %9, %cst_17 {dimension_numbers = #tpu.dot_dimension_numbers<[1], [0], [0], [1], [0, 0, 1, 1], [], []>} : vector<8x32xf32>, vector<32x64xf32>, vector<8x64xf32> -> vector<8x64xf32>
    %cst_18 = arith.constant dense<0.000000e+00> : vector<8x64xf32>
    %13 = tpu.matmul %5, %10, %cst_18 {dimension_numbers = #tpu.dot_dimension_numbers<[1], [0], [0], [1], [0, 0, 1, 1], [], []>} : vector<8x32xf32>, vector<32x64xf32>, vector<8x64xf32> -> vector<8x64xf32>
    %14 = vector.extract_strided_slice %11 {offsets = [0, 0], sizes = [8, 16], strides = [1, 1]} : vector<8x64xf32> to vector<8x16xf32>
    %15 = vector.extract_strided_slice %12 {offsets = [0, 0], sizes = [8, 16], strides = [1, 1]} : vector<8x64xf32> to vector<8x16xf32>
    %16 = vector.extract_strided_slice %13 {offsets = [0, 0], sizes = [8, 16], strides = [1, 1]} : vector<8x64xf32> to vector<8x16xf32>
    %cst_19 = arith.constant dense<0.000000e+00> : vector<8x8xf32>
    %17 = tpu.matmul %14, %15, %cst_19 {dimension_numbers = #tpu.dot_dimension_numbers<[1], [1], [0], [0], [0, 0, 1, 0], [], []>} : vector<8x16xf32>, vector<8x16xf32>, vector<8x8xf32> -> vector<8x8xf32>
    %cst_20 = arith.constant 0.000000e+00 : f32
    %18 = vector.broadcast %cst_20 : f32 to vector<8x8xf32>
    %19 = arith.cmpf ogt, %7, %18 : vector<8x8xf32>
    %cst_21 = arith.constant 9.99999971E-10 : f32
    %20 = vector.broadcast %cst_21 : f32 to vector<8x8xf32>
    %21 = arith.select %19, %20, %17 : vector<8x8xi1>, vector<8x8xf32>
    %cst_22 = arith.constant 2.500000e-01 : f32
    %22 = vector.broadcast %cst_22 : f32 to vector<8x8xf32>
    %23 = arith.mulf %21, %22 : vector<8x8xf32>
    %cst_23 = arith.constant dense<0xFF800000> : vector<8xf32>
    %24 = vector.multi_reduction <maximumf>, %23, %cst_23 [1] : vector<8x8xf32> to vector<8xf32>
    %25 = vector.shape_cast %24 : vector<8xf32> to vector<8x1xf32>
    %26 = vector.broadcast %25 : vector<8x1xf32> to vector<8x8xf32>
    %27 = arith.subf %23, %26 : vector<8x8xf32>
    %28 = math.exp %27 : vector<8x8xf32>
    %cst_24 = arith.constant dense<0.000000e+00> : vector<8xf32>
    %29 = vector.multi_reduction <add>, %28, %cst_24 [1] : vector<8x8xf32> to vector<8xf32>
    %30 = vector.shape_cast %29 : vector<8xf32> to vector<8x1xf32>
    %31 = tpu.reciprocal %30 : vector<8x1xf32> -> vector<8x1xf32>
    %32 = vector.broadcast %31 : vector<8x1xf32> to vector<8x8xf32>
    %33 = arith.mulf %28, %32 : vector<8x8xf32>
    %cst_25 = arith.constant dense<0.000000e+00> : vector<8x16xf32>
    %34 = tpu.matmul %33, %16, %cst_25 {dimension_numbers = #tpu.dot_dimension_numbers<[1], [0], [0], [1], [0, 0, 1, 1], [], []>} : vector<8x8xf32>, vector<8x16xf32>, vector<8x16xf32> -> vector<8x16xf32>
    %35 = vector.extract_strided_slice %11 {offsets = [0, 16], sizes = [8, 16], strides = [1, 1]} : vector<8x64xf32> to vector<8x16xf32>
    %36 = vector.extract_strided_slice %12 {offsets = [0, 16], sizes = [8, 16], strides = [1, 1]} : vector<8x64xf32> to vector<8x16xf32>
    %37 = vector.extract_strided_slice %13 {offsets = [0, 16], sizes = [8, 16], strides = [1, 1]} : vector<8x64xf32> to vector<8x16xf32>
    %cst_26 = arith.constant dense<0.000000e+00> : vector<8x8xf32>
    %38 = tpu.matmul %35, %36, %cst_26 {dimension_numbers = #tpu.dot_dimension_numbers<[1], [1], [0], [0], [0, 0, 1, 0], [], []>} : vector<8x16xf32>, vector<8x16xf32>, vector<8x8xf32> -> vector<8x8xf32>
    %cst_27 = arith.constant 0.000000e+00 : f32
    %39 = vector.broadcast %cst_27 : f32 to vector<8x8xf32>
    %40 = arith.cmpf ogt, %7, %39 : vector<8x8xf32>
    %cst_28 = arith.constant 9.99999971E-10 : f32
    %41 = vector.broadcast %cst_28 : f32 to vector<8x8xf32>
    %42 = arith.select %40, %41, %38 : vector<8x8xi1>, vector<8x8xf32>
    %cst_29 = arith.constant 2.500000e-01 : f32
    %43 = vector.broadcast %cst_29 : f32 to vector<8x8xf32>
    %44 = arith.mulf %42, %43 : vector<8x8xf32>
    %cst_30 = arith.constant dense<0xFF800000> : vector<8xf32>
    %45 = vector.multi_reduction <maximumf>, %44, %cst_30 [1] : vector<8x8xf32> to vector<8xf32>
    %46 = vector.shape_cast %45 : vector<8xf32> to vector<8x1xf32>
    %47 = vector.broadcast %46 : vector<8x1xf32> to vector<8x8xf32>
    %48 = arith.subf %44, %47 : vector<8x8xf32>
    %49 = math.exp %48 : vector<8x8xf32>
    %cst_31 = arith.constant dense<0.000000e+00> : vector<8xf32>
    %50 = vector.multi_reduction <add>, %49, %cst_31 [1] : vector<8x8xf32> to vector<8xf32>
    %51 = vector.shape_cast %50 : vector<8xf32> to vector<8x1xf32>
    %52 = tpu.reciprocal %51 : vector<8x1xf32> -> vector<8x1xf32>
    %53 = vector.broadcast %52 : vector<8x1xf32> to vector<8x8xf32>
    %54 = arith.mulf %49, %53 : vector<8x8xf32>
    %cst_32 = arith.constant dense<0.000000e+00> : vector<8x16xf32>
    %55 = tpu.matmul %54, %37, %cst_32 {dimension_numbers = #tpu.dot_dimension_numbers<[1], [0], [0], [1], [0, 0, 1, 1], [], []>} : vector<8x8xf32>, vector<8x16xf32>, vector<8x16xf32> -> vector<8x16xf32>
    %56 = vector.extract_strided_slice %11 {offsets = [0, 32], sizes = [8, 16], strides = [1, 1]} : vector<8x64xf32> to vector<8x16xf32>
    %57 = vector.extract_strided_slice %12 {offsets = [0, 32], sizes = [8, 16], strides = [1, 1]} : vector<8x64xf32> to vector<8x16xf32>
    %58 = vector.extract_strided_slice %13 {offsets = [0, 32], sizes = [8, 16], strides = [1, 1]} : vector<8x64xf32> to vector<8x16xf32>
    %cst_33 = arith.constant dense<0.000000e+00> : vector<8x8xf32>
    %59 = tpu.matmul %56, %57, %cst_33 {dimension_numbers = #tpu.dot_dimension_numbers<[1], [1], [0], [0], [0, 0, 1, 0], [], []>} : vector<8x16xf32>, vector<8x16xf32>, vector<8x8xf32> -> vector<8x8xf32>
    %cst_34 = arith.constant 0.000000e+00 : f32
    %60 = vector.broadcast %cst_34 : f32 to vector<8x8xf32>
    %61 = arith.cmpf ogt, %7, %60 : vector<8x8xf32>
    %cst_35 = arith.constant 9.99999971E-10 : f32
    %62 = vector.broadcast %cst_35 : f32 to vector<8x8xf32>
    %63 = arith.select %61, %62, %59 : vector<8x8xi1>, vector<8x8xf32>
    %cst_36 = arith.constant 2.500000e-01 : f32
    %64 = vector.broadcast %cst_36 : f32 to vector<8x8xf32>
    %65 = arith.mulf %63, %64 : vector<8x8xf32>
    %cst_37 = arith.constant dense<0xFF800000> : vector<8xf32>
    %66 = vector.multi_reduction <maximumf>, %65, %cst_37 [1] : vector<8x8xf32> to vector<8xf32>
    %67 = vector.shape_cast %66 : vector<8xf32> to vector<8x1xf32>
    %68 = vector.broadcast %67 : vector<8x1xf32> to vector<8x8xf32>
    %69 = arith.subf %65, %68 : vector<8x8xf32>
    %70 = math.exp %69 : vector<8x8xf32>
    %cst_38 = arith.constant dense<0.000000e+00> : vector<8xf32>
    %71 = vector.multi_reduction <add>, %70, %cst_38 [1] : vector<8x8xf32> to vector<8xf32>
    %72 = vector.shape_cast %71 : vector<8xf32> to vector<8x1xf32>
    %73 = tpu.reciprocal %72 : vector<8x1xf32> -> vector<8x1xf32>
    %74 = vector.broadcast %73 : vector<8x1xf32> to vector<8x8xf32>
    %75 = arith.mulf %70, %74 : vector<8x8xf32>
    %cst_39 = arith.constant dense<0.000000e+00> : vector<8x16xf32>
    %76 = tpu.matmul %75, %58, %cst_39 {dimension_numbers = #tpu.dot_dimension_numbers<[1], [0], [0], [1], [0, 0, 1, 1], [], []>} : vector<8x8xf32>, vector<8x16xf32>, vector<8x16xf32> -> vector<8x16xf32>
    %77 = vector.extract_strided_slice %11 {offsets = [0, 48], sizes = [8, 16], strides = [1, 1]} : vector<8x64xf32> to vector<8x16xf32>
    %78 = vector.extract_strided_slice %12 {offsets = [0, 48], sizes = [8, 16], strides = [1, 1]} : vector<8x64xf32> to vector<8x16xf32>
    %79 = vector.extract_strided_slice %13 {offsets = [0, 48], sizes = [8, 16], strides = [1, 1]} : vector<8x64xf32> to vector<8x16xf32>
    %cst_40 = arith.constant dense<0.000000e+00> : vector<8x8xf32>
    %80 = tpu.matmul %77, %78, %cst_40 {dimension_numbers = #tpu.dot_dimension_numbers<[1], [1], [0], [0], [0, 0, 1, 0], [], []>} : vector<8x16xf32>, vector<8x16xf32>, vector<8x8xf32> -> vector<8x8xf32>
    %cst_41 = arith.constant 0.000000e+00 : f32
    %81 = vector.broadcast %cst_41 : f32 to vector<8x8xf32>
    %82 = arith.cmpf ogt, %7, %81 : vector<8x8xf32>
    %cst_42 = arith.constant 9.99999971E-10 : f32
    %83 = vector.broadcast %cst_42 : f32 to vector<8x8xf32>
    %84 = arith.select %82, %83, %80 : vector<8x8xi1>, vector<8x8xf32>
    %cst_43 = arith.constant 2.500000e-01 : f32
    %85 = vector.broadcast %cst_43 : f32 to vector<8x8xf32>
    %86 = arith.mulf %84, %85 : vector<8x8xf32>
    %cst_44 = arith.constant dense<0xFF800000> : vector<8xf32>
    %87 = vector.multi_reduction <maximumf>, %86, %cst_44 [1] : vector<8x8xf32> to vector<8xf32>
    %88 = vector.shape_cast %87 : vector<8xf32> to vector<8x1xf32>
    %89 = vector.broadcast %88 : vector<8x1xf32> to vector<8x8xf32>
    %90 = arith.subf %86, %89 : vector<8x8xf32>
    %91 = math.exp %90 : vector<8x8xf32>
    %cst_45 = arith.constant dense<0.000000e+00> : vector<8xf32>
    %92 = vector.multi_reduction <add>, %91, %cst_45 [1] : vector<8x8xf32> to vector<8xf32>
    %93 = vector.shape_cast %92 : vector<8xf32> to vector<8x1xf32>
    %94 = tpu.reciprocal %93 : vector<8x1xf32> -> vector<8x1xf32>
    %95 = vector.broadcast %94 : vector<8x1xf32> to vector<8x8xf32>
    %96 = arith.mulf %91, %95 : vector<8x8xf32>
    %cst_46 = arith.constant dense<0.000000e+00> : vector<8x16xf32>
    %97 = tpu.matmul %96, %79, %cst_46 {dimension_numbers = #tpu.dot_dimension_numbers<[1], [0], [0], [1], [0, 0, 1, 1], [], []>} : vector<8x8xf32>, vector<8x16xf32>, vector<8x16xf32> -> vector<8x16xf32>
    %98 = tpu.concatenate %34, %55, %76, %97 in 1 : vector<8x16xf32>, vector<8x16xf32>, vector<8x16xf32>, vector<8x16xf32> -> vector<8x64xf32>
    %c0_47 = arith.constant 0 : index
    %c0_48 = arith.constant 0 : index
    %99 = vector.load %arg8[%c0_47, %c0_48] : memref<64x32xf32, #tpu.memory_space<vmem>>, vector<64x32xf32>
    %cst_49 = arith.constant dense<0.000000e+00> : vector<8x32xf32>
    %100 = tpu.matmul %98, %99, %cst_49 {dimension_numbers = #tpu.dot_dimension_numbers<[1], [0], [0], [1], [0, 0, 1, 1], [], []>} : vector<8x64xf32>, vector<64x32xf32>, vector<8x32xf32> -> vector<8x32xf32>
    %c0_50 = arith.constant 0 : index
    %c0_51 = arith.constant 0 : index
    %101 = vector.load %arg9[%c0_50, %c0_51] : memref<1x32xf32, #tpu.memory_space<vmem>>, vector<1x32xf32>
    %102 = vector.broadcast %101 : vector<1x32xf32> to vector<8x32xf32>
    %103 = arith.addf %100, %102 : vector<8x32xf32>
    %c0_52 = arith.constant 0 : index
    %c0_53 = arith.constant 0 : index
    %c0_54 = arith.constant 0 : index
    %104 = vector.load %arg10[%c0_52, %c0_53, %c0_54] : memref<1x8x32xf32, #tpu.memory_space<vmem>>, vector<1x8x32xf32>
    %105 = vector.shape_cast %104 : vector<1x8x32xf32> to vector<8x32xf32>
    %106 = vector.shape_cast %103 : vector<8x32xf32> to vector<1x8x32xf32>
    tpu.vector_store %arg10[%c0_52, %c0_53, %c0_54], %106 {strides = array<i32>} : memref<1x8x32xf32, #tpu.memory_space<vmem>>, vector<1x8x32xf32>,
    return
  }
  func.func @transform_0(%arg0: i32) -> (i32, i32, i32) {
    %c0_i32 = arith.constant 0 : i32
    %c0_i32_0 = arith.constant 0 : i32
    %c0_i32_1 = arith.constant 0 : i32
    return %arg0, %c0_i32, %c0_i32_0 : i32, i32, i32
  }
  func.func @transform_1(%arg0: i32) -> (i32, i32, i32) {
    %c0_i32 = arith.constant 0 : i32
    %c0_i32_0 = arith.constant 0 : i32
    %c0_i32_1 = arith.constant 0 : i32
    return %arg0, %c0_i32, %c0_i32_0 : i32, i32, i32
  }
  func.func @transform_2(%arg0: i32) -> (i32, i32, i32) {
    %c0_i32 = arith.constant 0 : i32
    %c0_i32_0 = arith.constant 0 : i32
    %c0_i32_1 = arith.constant 0 : i32
    return %arg0, %c0_i32, %c0_i32_0 : i32, i32, i32
  }
  func.func @transform_3(%arg0: i32) -> (i32, i32, i32) {
    %c0_i32 = arith.constant 0 : i32
    %c0_i32_0 = arith.constant 0 : i32
    %c0_i32_1 = arith.constant 0 : i32
    return %arg0, %c0_i32, %c0_i32_0 : i32, i32, i32
  }
  func.func @transform_4(%arg0: i32) -> (i32, i32) {
    %c0_i32 = arith.constant 0 : i32
    %c0_i32_0 = arith.constant 0 : i32
    %c0_i32_1 = arith.constant 0 : i32
    return %c0_i32, %c0_i32_0 : i32, i32
  }
  func.func @transform_5(%arg0: i32) -> (i32, i32) {
    %c0_i32 = arith.constant 0 : i32
    %c0_i32_0 = arith.constant 0 : i32
    %c0_i32_1 = arith.constant 0 : i32
    return %c0_i32, %c0_i32_0 : i32, i32
  }
  func.func @transform_6(%arg0: i32) -> (i32, i32) {
    %c0_i32 = arith.constant 0 : i32
    %c0_i32_0 = arith.constant 0 : i32
    %c0_i32_1 = arith.constant 0 : i32
    return %c0_i32, %c0_i32_0 : i32, i32
  }
  func.func @transform_7(%arg0: i32) -> (i32, i32) {
    %c0_i32 = arith.constant 0 : i32
    %c0_i32_0 = arith.constant 0 : i32
    %c0_i32_1 = arith.constant 0 : i32
    return %c0_i32, %c0_i32_0 : i32, i32
  }
  func.func @transform_8(%arg0: i32) -> (i32, i32) {
    %c0_i32 = arith.constant 0 : i32
    %c0_i32_0 = arith.constant 0 : i32
    %c0_i32_1 = arith.constant 0 : i32
    return %c0_i32, %c0_i32_0 : i32, i32
  }
  func.func @transform_9(%arg0: i32) -> (i32, i32, i32) {
    %c0_i32 = arith.constant 0 : i32
    %c0_i32_0 = arith.constant 0 : i32
    %c0_i32_1 = arith.constant 0 : i32
    return %arg0, %c0_i32, %c0_i32_0 : i32, i32, i32
  }
}

</mosaic_0001>

<llo_original>
// kernel: tpu_custom_call.1
$region0: #{tpu_custom_call.1}
  #allocation0 [shape = 'u32[]', space=smem, size = 0x4, offset = 0x4, fixed_abs, tag = 'smem constant byte address 0x4 - core index']
  #allocation1 [shape = 'u32[144,128]{1,0:T(1,128)}', space=vmem, size = 0x12000, scoped, tag = 'internal scratch']
  %s0 = inlined_call_operand.hbm [shape: f32[2,8,8], index: 0, kind: input, shape index: {}]
  %s1 = inlined_call_operand.hbm [shape: f32[2,8,32], index: 1, kind: input, shape index: {}]
  %s2 = inlined_call_operand.hbm [shape: f32[2,8,32], index: 2, kind: input, shape index: {}]
  %s3 = inlined_call_operand.hbm [shape: f32[2,8,32], index: 3, kind: input, shape index: {}]
  %s4 = inlined_call_operand.vmem [shape: f32[32,64], index: 4, kind: input, shape index: {}]
  %s5 = inlined_call_operand.vmem [shape: f32[32,64], index: 5, kind: input, shape index: {}]
  %s6 = inlined_call_operand.vmem [shape: f32[32,64], index: 6, kind: input, shape index: {}]
  %s7 = inlined_call_operand.vmem [shape: f32[64,32], index: 7, kind: input, shape index: {}]
  %s8 = inlined_call_operand.vmem [shape: f32[1,32], index: 8, kind: input, shape index: {}]
  %s9 = inlined_call_operand.hbm [shape: f32[2,8,32], index: 9, kind: output, shape index: {}]
  %s10 = sld [smem:[#allocation0]]
  $region85: #{tpu_custom_call.1} parent=0
    _
  %s12 = ssub.s32 1, %s10
  %s13 = scalar_select 0, %s12, %s10
  $region1: #{tpu_custom_call.1} parent=0
    #allocation2 [shape = 'u8[8192]{0}', space=vmem, size = 0x2000, scoped, tag = 'input window, operand 0']
    #allocation3 [shape = 's32[2]{0}', space=sflag, size = 0x8, scoped, tag = 'scoped memory for tpu_custom_call.1']
    #allocation4 [shape = 's32[2]{0}', space=sflag, size = 0x8, scoped, tag = 'scoped memory for tpu_custom_call.1']
    #allocation5 [shape = 'u8[8192]{0}', space=vmem, size = 0x2000, scoped, tag = 'input window, operand 1']
    #allocation6 [shape = 's32[2]{0}', space=sflag, size = 0x8, scoped, tag = 'scoped memory for tpu_custom_call.1']
    #allocation7 [shape = 'u8[8192]{0}', space=vmem, size = 0x2000, scoped, tag = 'input window, operand 2']
    #allocation8 [shape = 'u8[8192]{0}', space=vmem, size = 0x2000, scoped, tag = 'input window, operand 3']
    #allocation9 [shape = 's32[2]{0}', space=sflag, size = 0x8, scoped, tag = 'scoped memory for tpu_custom_call.1']
    #allocation10 [shape = 'u8[8192]{0}', space=vmem, size = 0x2000, scoped, tag = 'output window, operand 0']
    %14 = vsyncpa [#allocation3], 0
    %s15 = scalar_lea.sflag [#allocation3], 1
    %16 = vsyncpa %s15, 0
    %17 = vsyncpa [#allocation6], 0
    %s18 = scalar_lea.sflag [#allocation6], 1
    %19 = vsyncpa %s18, 0
    %20 = vsyncpa [#allocation9], 0
    %s21 = scalar_lea.sflag [#allocation9], 1
    %22 = vsyncpa %s21, 0
    %23 = vsyncpa [#allocation4], 0
    %s24 = scalar_lea.sflag [#allocation4], 1
    %25 = vsyncpa %s24, 0
    loop: start=0, step=1, limit=4
    $region2: #{tpu_custom_call.1} parent=1 // loop_pre_header
      _
    $region3: #{tpu_custom_call.1} parent=1 // loop_header
      %s27 = sphi 0, %s31
      %p28 = scmp.ge.s32.totalorder %s27, 4
      %s37 = sphi 0, %s39
      %s40 = sphi 0, %s37
      %s41 = sphi 0, %s40
      %s57 = sphi 0, %s41
      %s63 = sphi 0, %s65
      %s66 = sphi 0, %s63
      %s67 = sphi 0, %s66
      %s83 = sphi 0, %s67
      %s89 = sphi 0, %s91
      %s92 = sphi 0, %s89
      %s93 = sphi 0, %s92
      %s109 = sphi 0, %s93
      %s115 = sphi 0, %s117
      %s118 = sphi 0, %s115
      %s119 = sphi 0, %s118
      %s135 = sphi 0, %s119
      %s139 = sphi 0, %s139
      %s141 = sphi 0, %s139
      %s142 = sphi 0, %s141
      %s156 = sphi 0, %s142
      %s160 = sphi 0, %s160
      %s162 = sphi 0, %s160
      %s163 = sphi 0, %s162
      %s177 = sphi 0, %s163
      %s181 = sphi 0, %s181
      %s183 = sphi 0, %s181
      %s184 = sphi 0, %s183
      %s198 = sphi 0, %s184
      %s202 = sphi 0, %s202
      %s204 = sphi 0, %s202
      %s205 = sphi 0, %s204
      %s219 = sphi 0, %s205
      %s223 = sphi 0, %s223
      %s225 = sphi 0, %s223
      %s226 = sphi 0, %s225
      %s240 = sphi 0, %s226
      %s246 = sphi 0, %s248
      %s249 = sphi 0, %s246
      %s250 = sphi 0, %s249
      %s266 = sphi 0, %s250
    $region4: #{tpu_custom_call.1} parent=1 // loop_header_branch
      %30 = sbr.rel (%p28) target = $region8
    $region5: #{tpu_custom_call.1} parent=1 // loop_body
      %s32 = ssub.s32 %s27, 1
      %s33 = ssub.s32 %s27, 2
      %s34 = sadd.s32 %s27, 1
      %s35 = ssub.s32 %s27, %s34
      %p36 = scmp.eq.s32.totalorder %s35, 0
      %s38 = sadd.s32 %s37, 1
      %s39 = scalar_select %p36, %s37, %s38
      %p42 = pneg %p36
      %p43 = scmp.eq.s32.totalorder %s27, 1
      %p44 = por %p42, %p43
      %p45 = scmp.ne.s32.totalorder %s37, %s40
      %p46 = scmp.eq.s32.totalorder %s27, 0
      %p47 = por %p45, %p46
      %p48 = scmp.ne.s32.totalorder %s37, %s40
      %p49 = scmp.eq.s32.totalorder %s32, 1
      %p50 = por %p48, %p49
      %p51 = scmp.ne.s32.totalorder %s40, %s41
      %p52 = scmp.eq.s32.totalorder %s32, 0
      %p53 = por %p51, %p52
      %p54 = scmp.ne.s32.totalorder %s40, %s41
      %p55 = scmp.eq.s32.totalorder %s33, 1
      %p56 = por %p54, %p55
      %p58 = scmp.ne.s32.totalorder %s41, %s57
      %p59 = scmp.eq.s32.totalorder %s33, 0
      %p60 = por %p58, %p59
      %s61 = ssub.s32 %s27, %s34
      %p62 = scmp.eq.s32.totalorder %s61, 0
      %s64 = sadd.s32 %s63, 1
      %s65 = scalar_select %p62, %s63, %s64
      %p68 = pneg %p62
      %p69 = scmp.eq.s32.totalorder %s27, 1
      %p70 = por %p68, %p69
      %p71 = scmp.ne.s32.totalorder %s63, %s66
      %p72 = scmp.eq.s32.totalorder %s27, 0
      %p73 = por %p71, %p72
      %p74 = scmp.ne.s32.totalorder %s63, %s66
      %p75 = scmp.eq.s32.totalorder %s32, 1
      %p76 = por %p74, %p75
      %p77 = scmp.ne.s32.totalorder %s66, %s67
      %p78 = scmp.eq.s32.totalorder %s32, 0
      %p79 = por %p77, %p78
      %p80 = scmp.ne.s32.totalorder %s66, %s67
      %p81 = scmp.eq.s32.totalorder %s33, 1
      %p82 = por %p80, %p81
      %p84 = scmp.ne.s32.totalorder %s67, %s83
      %p85 = scmp.eq.s32.totalorder %s33, 0
      %p86 = por %p84, %p85
      %s87 = ssub.s32 %s27, %s34
      %p88 = scmp.eq.s32.totalorder %s87, 0
      %s90 = sadd.s32 %s89, 1
      %s91 = scalar_select %p88, %s89, %s90
      %p94 = pneg %p88
      %p95 = scmp.eq.s32.totalorder %s27, 1
      %p96 = por %p94, %p95
      %p97 = scmp.ne.s32.totalorder %s89, %s92
      %p98 = scmp.eq.s32.totalorder %s27, 0
      %p99 = por %p97, %p98
      %p100 = scmp.ne.s32.totalorder %s89, %s92
      %p101 = scmp.eq.s32.totalorder %s32, 1
      %p102 = por %p100, %p101
      %p103 = scmp.ne.s32.totalorder %s92, %s93
      %p104 = scmp.eq.s32.totalorder %s32, 0
      %p105 = por %p103, %p104
      %p106 = scmp.ne.s32.totalorder %s92, %s93
      %p107 = scmp.eq.s32.totalorder %s33, 1
      %p108 = por %p106, %p107
      %p110 = scmp.ne.s32.totalorder %s93, %s109
      %p111 = scmp.eq.s32.totalorder %s33, 0
      %p112 = por %p110, %p111
      %s113 = ssub.s32 %s27, %s34
      %p114 = scmp.eq.s32.totalorder %s113, 0
      %s116 = sadd.s32 %s115, 1
      %s117 = scalar_select %p114, %s115, %s116
      %p120 = pneg %p114
      %p121 = scmp.eq.s32.totalorder %s27, 1
      %p122 = por %p120, %p121
      %p123 = scmp.ne.s32.totalorder %s115, %s118
      %p124 = scmp.eq.s32.totalorder %s27, 0
      %p125 = por %p123, %p124
      %p126 = scmp.ne.s32.totalorder %s115, %s118
      %p127 = scmp.eq.s32.totalorder %s32, 1
      %p128 = por %p126, %p127
      %p129 = scmp.ne.s32.totalorder %s118, %s119
      %p130 = scmp.eq.s32.totalorder %s32, 0
      %p131 = por %p129, %p130
      %p132 = scmp.ne.s32.totalorder %s118, %s119
      %p133 = scmp.eq.s32.totalorder %s33, 1
      %p134 = por %p132, %p133
      %p136 = scmp.ne.s32.totalorder %s119, %s135
      %p137 = scmp.eq.s32.totalorder %s33, 0
      %p138 = por %p136, %p137
      %s140 = sadd.s32 %s139, 1
      %p143 = scmp.eq.s32.totalorder %s27, 1
      %p144 = scmp.ne.s32.totalorder %s139, %s141
      %p145 = scmp.eq.s32.totalorder %s27, 0
      %p146 = por %p144, %p145
      %p147 = scmp.ne.s32.totalorder %s139, %s141
      %p148 = scmp.eq.s32.totalorder %s32, 1
      %p149 = por %p147, %p148
      %p150 = scmp.ne.s32.totalorder %s141, %s142
      %p151 = scmp.eq.s32.totalorder %s32, 0
      %p152 = por %p150, %p151
      %p153 = scmp.ne.s32.totalorder %s141, %s142
      %p154 = scmp.eq.s32.totalorder %s33, 1
      %p155 = por %p153, %p154
      %p157 = scmp.ne.s32.totalorder %s142, %s156
      %p158 = scmp.eq.s32.totalorder %s33, 0
      %p159 = por %p157, %p158
      %s161 = sadd.s32 %s160, 1
      %p164 = scmp.eq.s32.totalorder %s27, 1
      %p165 = scmp.ne.s32.totalorder %s160, %s162
      %p166 = scmp.eq.s32.totalorder %s27, 0
      %p167 = por %p165, %p166
      %p168 = scmp.ne.s32.totalorder %s160, %s162
      %p169 = scmp.eq.s32.totalorder %s32, 1
      %p170 = por %p168, %p169
      %p171 = scmp.ne.s32.totalorder %s162, %s163
      %p172 = scmp.eq.s32.totalorder %s32, 0
      %p173 = por %p171, %p172
      %p174 = scmp.ne.s32.totalorder %s162, %s163
      %p175 = scmp.eq.s32.totalorder %s33, 1
      %p176 = por %p174, %p175
      %p178 = scmp.ne.s32.totalorder %s163, %s177
      %p179 = scmp.eq.s32.totalorder %s33, 0
      %p180 = por %p178, %p179
      %s182 = sadd.s32 %s181, 1
      %p185 = scmp.eq.s32.totalorder %s27, 1
      %p186 = scmp.ne.s32.totalorder %s181, %s183
      %p187 = scmp.eq.s32.totalorder %s27, 0
      %p188 = por %p186, %p187
      %p189 = scmp.ne.s32.totalorder %s181, %s183
      %p190 = scmp.eq.s32.totalorder %s32, 1
      %p191 = por %p189, %p190
      %p192 = scmp.ne.s32.totalorder %s183, %s184
      %p193 = scmp.eq.s32.totalorder %s32, 0
      %p194 = por %p192, %p193
      %p195 = scmp.ne.s32.totalorder %s183, %s184
      %p196 = scmp.eq.s32.totalorder %s33, 1
      %p197 = por %p195, %p196
      %p199 = scmp.ne.s32.totalorder %s184, %s198
      %p200 = scmp.eq.s32.totalorder %s33, 0
      %p201 = por %p199, %p200
      %s203 = sadd.s32 %s202, 1
      %p206 = scmp.eq.s32.totalorder %s27, 1
      %p207 = scmp.ne.s32.totalorder %s202, %s204
      %p208 = scmp.eq.s32.totalorder %s27, 0
      %p209 = por %p207, %p208
      %p210 = scmp.ne.s32.totalorder %s202, %s204
      %p211 = scmp.eq.s32.totalorder %s32, 1
      %p212 = por %p210, %p211
      %p213 = scmp.ne.s32.totalorder %s204, %s205
      %p214 = scmp.eq.s32.totalorder %s32, 0
      %p215 = por %p213, %p214
      %p216 = scmp.ne.s32.totalorder %s204, %s205
      %p217 = scmp.eq.s32.totalorder %s33, 1
      %p218 = por %p216, %p217
      %p220 = scmp.ne.s32.totalorder %s205, %s219
      %p221 = scmp.eq.s32.totalorder %s33, 0
      %p222 = por %p220, %p221
      %s224 = sadd.s32 %s223, 1
      %p227 = scmp.eq.s32.totalorder %s27, 1
      %p228 = scmp.ne.s32.totalorder %s223, %s225
      %p229 = scmp.eq.s32.totalorder %s27, 0
      %p230 = por %p228, %p229
      %p231 = scmp.ne.s32.totalorder %s223, %s225
      %p232 = scmp.eq.s32.totalorder %s32, 1
      %p233 = por %p231, %p232
      %p234 = scmp.ne.s32.totalorder %s225, %s226
      %p235 = scmp.eq.s32.totalorder %s32, 0
      %p236 = por %p234, %p235
      %p237 = scmp.ne.s32.totalorder %s225, %s226
      %p238 = scmp.eq.s32.totalorder %s33, 1
      %p239 = por %p237, %p238
      %p241 = scmp.ne.s32.totalorder %s226, %s240
      %p242 = scmp.eq.s32.totalorder %s33, 0
      %p243 = por %p241, %p242
      %s244 = ssub.s32 %s27, %s34
      %p245 = scmp.eq.s32.totalorder %s244, 0
      %s247 = sadd.s32 %s246, 1
      %s248 = scalar_select %p245, %s246, %s247
      %p251 = pneg %p245
      %p252 = scmp.eq.s32.totalorder %s27, 1
      %p253 = por %p251, %p252
      %p254 = scmp.ne.s32.totalorder %s246, %s249
      %p255 = scmp.eq.s32.totalorder %s27, 0
      %p256 = por %p254, %p255
      %p257 = scmp.ne.s32.totalorder %s246, %s249
      %p258 = scmp.eq.s32.totalorder %s32, 1
      %p259 = por %p257, %p258
      %p260 = scmp.ne.s32.totalorder %s249, %s250
      %p261 = scmp.eq.s32.totalorder %s32, 0
      %p262 = por %p260, %p261
      %p263 = scmp.ne.s32.totalorder %s249, %s250
      %p264 = scmp.eq.s32.totalorder %s33, 1
      %p265 = por %p263, %p264
      %p267 = scmp.ne.s32.totalorder %s250, %s266
      %p268 = scmp.eq.s32.totalorder %s33, 0
      %p269 = por %p267, %p268
      %p270 = scmp.le.s32.totalorder 1, %s27
      %p271 = scmp.lt.s32.totalorder %s27, 3
      %p272 = pnand %p270, %p271
      %p273 = pneg %p272
      // Predicated region
      $region9: #{tpu_custom_call.1} parent=5 // pred_check
        _
      $region10: #{tpu_custom_call.1} parent=5 // pred_check_branch
        %275 = sbr.rel (%p272) target = $region12
      $region11: #{tpu_custom_call.1} parent=5 // pred_region
        %s276 = ssub.s32 %s27, 1
        // Predicated region
        $region13: #{tpu_custom_call.1} parent=11 // pred_check
          %p277 = pneg %p152
        $region14: #{tpu_custom_call.1} parent=11 // pred_check_branch
          %279 = sbr.rel (%p277) target = $region16
        $region15: #{tpu_custom_call.1} parent=11 // pred_region
          _
        $region16: #{tpu_custom_call.1} parent=11 // pred_fallthru
          _
        // Predicated region
        $region17: #{tpu_custom_call.1} parent=11 // pred_check
          %p280 = pneg %p173
        $region18: #{tpu_custom_call.1} parent=11 // pred_check_branch
          %282 = sbr.rel (%p280) target = $region20
        $region19: #{tpu_custom_call.1} parent=11 // pred_region
          _
        $region20: #{tpu_custom_call.1} parent=11 // pred_fallthru
          _
        // Predicated region
        $region21: #{tpu_custom_call.1} parent=11 // pred_check
          %p283 = pneg %p194
        $region22: #{tpu_custom_call.1} parent=11 // pred_check_branch
          %285 = sbr.rel (%p283) target = $region24
        $region23: #{tpu_custom_call.1} parent=11 // pred_region
          _
        $region24: #{tpu_custom_call.1} parent=11 // pred_fallthru
          _
        // Predicated region
        $region25: #{tpu_custom_call.1} parent=11 // pred_check
          %p286 = pneg %p215
        $region26: #{tpu_custom_call.1} parent=11 // pred_check_branch
          %288 = sbr.rel (%p286) target = $region28
        $region27: #{tpu_custom_call.1} parent=11 // pred_region
          _
        $region28: #{tpu_custom_call.1} parent=11 // pred_fallthru
          _
        // Predicated region
        $region29: #{tpu_custom_call.1} parent=11 // pred_check
          %p289 = pneg %p236
        $region30: #{tpu_custom_call.1} parent=11 // pred_check_branch
          %291 = sbr.rel (%p289) target = $region32
        $region31: #{tpu_custom_call.1} parent=11 // pred_region
          _
        $region32: #{tpu_custom_call.1} parent=11 // pred_fallthru
          _
      $region12: #{tpu_custom_call.1} parent=5 // pred_fallthru
        _
      %p292 = scmp.lt.s32.totalorder %s27, 2
      // Predicated region
      $region33: #{tpu_custom_call.1} parent=5 // pred_check
        %p293 = pneg %p292
      $region34: #{tpu_custom_call.1} parent=5 // pred_check_branch
        %295 = sbr.rel (%p293) target = $region36
      $region35: #{tpu_custom_call.1} parent=5 // pred_region
        // Predicated region
        $region37: #{tpu_custom_call.1} parent=35 // pred_check
          %p296 = pneg %p47
        $region38: #{tpu_custom_call.1} parent=35 // pred_check_branch
          %298 = sbr.rel (%p296) target = $region40
        $region39: #{tpu_custom_call.1} parent=35 // pred_region
          %s299 = sand.u32 %s37, 1
          %s300 = scalar_lea.sflag [#allocation3], %s299
          %s301 = sand.u32 %s37, 1
          %s302 = smul.addr %s301, 8
          %s303 = scalar_lea.vmem [#allocation2], %s302
          %s305 = ssub.s32 128, 128
          %306 = vsyncadd %s300, %s305
          %s307 = smul.addr %s27, 128
          %s308 = scalar_lea.hbm %s0, %s307
          %s310 = sshll.u32 %s303, 4
          %s311 = int_to_ptr.vmem [resolvable:$true] %s310
          %313 = dma.hbm_to_vmem [thread:$0]  %s308, 128, %s311, %s300
        $region40: #{tpu_custom_call.1} parent=35 // pred_fallthru
          _
        // Predicated region
        $region41: #{tpu_custom_call.1} parent=35 // pred_check
          %p314 = pneg %p73
        $region42: #{tpu_custom_call.1} parent=35 // pred_check_branch
          %316 = sbr.rel (%p314) target = $region44
        $region43: #{tpu_custom_call.1} parent=35 // pred_region
          %s317 = sand.u32 %s27, 1
          %s318 = scalar_lea.sflag [#allocation6], %s317
          %s319 = sand.u32 %s63, 1
          %s320 = smul.addr %s319, 8
          %s321 = scalar_lea.vmem [#allocation5], %s320
          %s323 = ssub.s32 128, 128
          %324 = vsyncadd %s318, %s323
          %s325 = smul.addr %s27, 128
          %s326 = scalar_lea.hbm %s1, %s325
          %s328 = sshll.u32 %s321, 4
          %s329 = int_to_ptr.vmem [resolvable:$true] %s328
          %331 = dma.hbm_to_vmem [thread:$0]  %s326, 128, %s329, %s318
        $region44: #{tpu_custom_call.1} parent=35 // pred_fallthru
          _
        // Predicated region
        $region45: #{tpu_custom_call.1} parent=35 // pred_check
          %p332 = pneg %p99
        $region46: #{tpu_custom_call.1} parent=35 // pred_check_branch
          %334 = sbr.rel (%p332) target = $region48
        $region47: #{tpu_custom_call.1} parent=35 // pred_region
          %s335 = sand.u32 %s27, 1
          %s336 = scalar_lea.sflag [#allocation6], %s335
          %s337 = sand.u32 %s89, 1
          %s338 = smul.addr %s337, 8
          %s339 = scalar_lea.vmem [#allocation7], %s338
          %s341 = ssub.s32 128, 128
          %342 = vsyncadd %s336, %s341
          %s343 = smul.addr %s27, 128
          %s344 = scalar_lea.hbm %s2, %s343
          %s346 = sshll.u32 %s339, 4
          %s347 = int_to_ptr.vmem [resolvable:$true] %s346
          %349 = dma.hbm_to_vmem [thread:$0]  %s344, 128, %s347, %s336
        $region48: #{tpu_custom_call.1} parent=35 // pred_fallthru
          _
        // Predicated region
        $region49: #{tpu_custom_call.1} parent=35 // pred_check
          %p350 = pneg %p125
        $region50: #{tpu_custom_call.1} parent=35 // pred_check_branch
          %352 = sbr.rel (%p350) target = $region52
        $region51: #{tpu_custom_call.1} parent=35 // pred_region
          %s353 = sand.u32 %s115, 1
          %s354 = scalar_lea.sflag [#allocation9], %s353
          %s355 = sand.u32 %s115, 1
          %s356 = smul.addr %s355, 8
          %s357 = scalar_lea.vmem [#allocation8], %s356
          %s359 = ssub.s32 128, 128
          %360 = vsyncadd %s354, %s359
          %s361 = smul.addr %s27, 128
          %s362 = scalar_lea.hbm %s3, %s361
          %s364 = sshll.u32 %s357, 4
          %s365 = int_to_ptr.vmem [resolvable:$true] %s364
          %367 = dma.hbm_to_vmem [thread:$0]  %s362, 128, %s365, %s354
        $region52: #{tpu_custom_call.1} parent=35 // pred_fallthru
          _
      $region36: #{tpu_custom_call.1} parent=5 // pred_fallthru
        _
      %p368 = scmp.le.s32.totalorder 1, %s27
      %p369 = scmp.lt.s32.totalorder %s27, 3
      %p370 = pnand %p368, %p369
      %p371 = pneg %p370
      // Predicated region
      $region53: #{tpu_custom_call.1} parent=5 // pred_check
        _
      $region54: #{tpu_custom_call.1} parent=5 // pred_check_branch
        %373 = sbr.rel (%p370) target = $region56
      $region55: #{tpu_custom_call.1} parent=5 // pred_region
        %s374 = ssub.s32 %s27, 1
        %s375 = sand.u32 %s40, 1
        %s376 = scalar_lea.sflag [#allocation3], %s375
        %s377 = sand.u32 %s40, 1
        %s378 = smul.addr %s377, 8
        %s379 = scalar_lea.vmem [#allocation2], %s378
        // Predicated region
        $region57: #{tpu_custom_call.1} parent=55 // pred_check
          %p380 = pneg %p53
        $region58: #{tpu_custom_call.1} parent=55 // pred_check_branch
          %382 = sbr.rel (%p380) target = $region60
        $region59: #{tpu_custom_call.1} parent=55 // pred_region
          %383 = dma.done %s376, 128
        $region60: #{tpu_custom_call.1} parent=55 // pred_fallthru
          _
        %s384 = sand.u32 %s32, 1
        %s385 = scalar_lea.sflag [#allocation6], %s384
        %s386 = sand.u32 %s66, 1
        %s387 = smul.addr %s386, 8
        %s388 = scalar_lea.vmem [#allocation5], %s387
        // Predicated region
        $region61: #{tpu_custom_call.1} parent=55 // pred_check
          %p389 = pneg %p79
        $region62: #{tpu_custom_call.1} parent=55 // pred_check_branch
          %391 = sbr.rel (%p389) target = $region64
        $region63: #{tpu_custom_call.1} parent=55 // pred_region
          %392 = dma.done %s385, 128
        $region64: #{tpu_custom_call.1} parent=55 // pred_fallthru
          _
        %s393 = sand.u32 %s32, 1
        %s394 = scalar_lea.sflag [#allocation6], %s393
        %s395 = sand.u32 %s92, 1
        %s396 = smul.addr %s395, 8
        %s397 = scalar_lea.vmem [#allocation7], %s396
        // Predicated region
        $region65: #{tpu_custom_call.1} parent=55 // pred_check
          %p398 = pneg %p105
        $region66: #{tpu_custom_call.1} parent=55 // pred_check_branch
          %400 = sbr.rel (%p398) target = $region68
        $region67: #{tpu_custom_call.1} parent=55 // pred_region
          %401 = dma.done %s394, 128
        $region68: #{tpu_custom_call.1} parent=55 // pred_fallthru
          _
        %s402 = sand.u32 %s118, 1
        %s403 = scalar_lea.sflag [#allocation9], %s402
        %s404 = sand.u32 %s118, 1
        %s405 = smul.addr %s404, 8
        %s406 = scalar_lea.vmem [#allocation8], %s405
        // Predicated region
        $region69: #{tpu_custom_call.1} parent=55 // pred_check
          %p407 = pneg %p131
        $region70: #{tpu_custom_call.1} parent=55 // pred_check_branch
          %409 = sbr.rel (%p407) target = $region72
        $region71: #{tpu_custom_call.1} parent=55 // pred_region
          %410 = dma.done %s403, 128
        $region72: #{tpu_custom_call.1} parent=55 // pred_fallthru
          _
        %s411 = sand.u32 %s40, 1
        %s412 = scalar_lea.sflag [#allocation3], %s411
        %s413 = sand.u32 %s40, 1
        %s414 = smul.addr %s413, 8
        %s415 = scalar_lea.vmem [#allocation2], %s414
        %p416 = pneg %p53
        %p417 = pneg %p50
        %s418 = sand.u32 %s32, 1
        %s419 = scalar_lea.sflag [#allocation6], %s418
        %s420 = sand.u32 %s66, 1
        %s421 = smul.addr %s420, 8
        %s422 = scalar_lea.vmem [#allocation5], %s421
        %p423 = pneg %p79
        %p424 = pneg %p76
        %s425 = sand.u32 %s32, 1
        %s426 = scalar_lea.sflag [#allocation6], %s425
        %s427 = sand.u32 %s92, 1
        %s428 = smul.addr %s427, 8
        %s429 = scalar_lea.vmem [#allocation7], %s428
        %p430 = pneg %p105
        %p431 = pneg %p102
        %s432 = sand.u32 %s118, 1
        %s433 = scalar_lea.sflag [#allocation9], %s432
        %s434 = sand.u32 %s118, 1
        %s435 = smul.addr %s434, 8
        %s436 = scalar_lea.vmem [#allocation8], %s435
        %p437 = pneg %p131
        %p438 = pneg %p128
        %p439 = pneg %p152
        %p440 = pneg %p149
        %p441 = pneg %p173
        %p442 = pneg %p170
        %p443 = pneg %p194
        %p444 = pneg %p191
        %p445 = pneg %p215
        %p446 = pneg %p212
        %p447 = pneg %p236
        %p448 = pneg %p233
        %p449 = pneg %p262
        %p450 = pneg %p259
        %s451 = sand.u32 %s249, 1
        %s452 = scalar_lea.sflag [#allocation4], %s451
        %s453 = sand.u32 %s249, 1
        %s454 = smul.addr %s453, 8
        %s455 = scalar_lea.vmem [#allocation10], %s454
        %v456 = vld [vmem:[%s388] sm:$0xff]
        %v457 = vld [vmem:[%s397] sm:$0xff]
        %v458 = vld [vmem:[%s406] sm:$0xff]
        %v459 = vld [vmem:[%s379] sm:$0xff]
        %v460 = vld [vmem:[%s4] sm:$0xff]
        %v461 = vld [vmem:[%s4 + $0x8] sm:$0xff]
        %v462 = vld [vmem:[%s4 + $0x10] sm:$0xff]
        %v463 = vld [vmem:[%s4 + $0x18] sm:$0xff]
        %v464 = vld [vmem:[%s5] sm:$0xff]
        %v465 = vld [vmem:[%s5 + $0x8] sm:$0xff]
        %v466 = vld [vmem:[%s5 + $0x10] sm:$0xff]
        %v467 = vld [vmem:[%s5 + $0x18] sm:$0xff]
        %v468 = vld [vmem:[%s6] sm:$0xff]
        %v469 = vld [vmem:[%s6 + $0x8] sm:$0xff]
        %v470 = vld [vmem:[%s6 + $0x10] sm:$0xff]
        %v471 = vld [vmem:[%s6 + $0x18] sm:$0xff]
        %vm472 = vcmask 261120
        %v474 = vsel %vm472, %v456, 0
        %476 = vmatprep.subr.mxu0 0.0
        %477 = vmatpush1.msra.mxu0 %v460
        %478 = vmatprep.subr.mxu0 0.0
        %479 = vmatpush1.msra.mxu0 %v461
        %480 = vmatprep.subr.mxu0 0.0
        %481 = vmatpush1.msra.mxu0 %v462
        %482 = vmatprep.subr.mxu0 0.0
        %483 = vmatpush1.msra.mxu0 %v463
        %484 = vmatprep.subr.mxu0 0.0
        %485 = vmatpush1.msra.mxu0 0.0
        %486 = vmatprep.subr.mxu0 0.0
        %487 = vmatpush1.msra.mxu0 0.0
        %488 = vmatprep.subr.mxu0 0.0
        %489 = vmatpush1.msra.mxu0 0.0
        %490 = vmatprep.subr.mxu0 0.0
        %491 = vmatpush1.msra.mxu0 0.0
        %492 = vmatprep.subr.mxu0 0.0
        %493 = vmatpush1.msra.mxu0 0.0
        %494 = vmatprep.subr.mxu0 0.0
        %495 = vmatpush1.msra.mxu0 0.0
        %496 = vmatprep.subr.mxu0 0.0
        %497 = vmatpush1.msra.mxu0 0.0
        %498 = vmatprep.subr.mxu0 0.0
        %499 = vmatpush1.msra.mxu0 0.0
        %500 = vmatprep.subr.mxu0 0.0
        %501 = vmatpush1.msra.mxu0 0.0
        %502 = vmatprep.subr.mxu0 0.0
        %503 = vmatpush1.msra.mxu0 0.0
        %504 = vmatprep.subr.mxu0 0.0
        %505 = vmatpush1.msra.mxu0 0.0
        %506 = vmatprep.subr.mxu0 0.0
        %507 = vmatpush1.msra.mxu0 0.0
        %508 = vmatprep.subr.mxu0 0.0
        %509 = vmatpush1.msra.mxu0 0.0
        %510 = vmatprep.subr.mxu0 0.0
        %511 = vmatpush1.msra.mxu0 0.0
        %512 = vmatprep.subr.mxu0 0.0
        %513 = vmatpush1.msra.mxu0 0.0
        %514 = vmatprep.subr.mxu0 0.0
        %515 = vmatpush1.msra.mxu0 0.0
        %516 = vmatprep.subr.mxu0 0.0
        %517 = vmatpush1.msra.mxu0 0.0
        %518 = vmatprep.subr.mxu0 0.0
        %519 = vmatpush1.msra.mxu0 0.0
        %520 = vmatprep.subr.mxu0 0.0
        %521 = vmatpush1.msra.mxu0 0.0
        %522 = vmatprep.subr.mxu0 0.0
        %523 = vmatpush1.msra.mxu0 0.0
        %524 = vmatprep.subr.mxu0 0.0
        %525 = vmatpush1.msra.mxu0 0.0
        %526 = vmatprep.subr.mxu0 0.0
        %527 = vmatpush1.msra.mxu0 0.0
        %528 = vmatprep.subr.mxu0 0.0
        %529 = vmatpush1.msra.mxu0 0.0
        %530 = vmatprep.subr.mxu0 0.0
        %531 = vmatpush1.msra.mxu0 0.0
        %532 = vmatprep.subr.mxu0 0.0
        %533 = vmatpush1.msra.mxu0 0.0
        %534 = vmatprep.subr.mxu0 0.0
        %535 = vmatpush1.msra.mxu0 0.0
        %536 = vmatprep.subr.mxu0 0.0
        %537 = vmatpush1.msra.mxu0 0.0
        %538 = vmatprep.subr.mxu0 0.0
        %539 = vmatpush1.msra.mxu0 0.0
        %540 = vmatprep.mubr.f32.mxu0 0.0
        %541 = vmatmul.mubr.f32.gmra.mrb[0].mxu0 %v474
        %v542 = vpop.f32.mrb[0].mxu0
        %v543 = vadd.f32 0.0, %v542
        %v544 = vpop.f32.mrb[0].mxu0
        %545 = vdwg.mxu0
        %v547 = vsel %vm472, %v457, 0
        %549 = vmatprep.subr.mxu0 0.0
        %550 = vmatpush1.msra.mxu0 %v464
        %551 = vmatprep.subr.mxu0 0.0
        %552 = vmatpush1.msra.mxu0 %v465
        %553 = vmatprep.subr.mxu0 0.0
        %554 = vmatpush1.msra.mxu0 %v466
        %555 = vmatprep.subr.mxu0 0.0
        %556 = vmatpush1.msra.mxu0 %v467
        %557 = vmatprep.subr.mxu0 0.0
        %558 = vmatpush1.msra.mxu0 0.0
        %559 = vmatprep.subr.mxu0 0.0
        %560 = vmatpush1.msra.mxu0 0.0
        %561 = vmatprep.subr.mxu0 0.0
        %562 = vmatpush1.msra.mxu0 0.0
        %563 = vmatprep.subr.mxu0 0.0
        %564 = vmatpush1.msra.mxu0 0.0
        %565 = vmatprep.subr.mxu0 0.0
        %566 = vmatpush1.msra.mxu0 0.0
        %567 = vmatprep.subr.mxu0 0.0
        %568 = vmatpush1.msra.mxu0 0.0
        %569 = vmatprep.subr.mxu0 0.0
        %570 = vmatpush1.msra.mxu0 0.0
        %571 = vmatprep.subr.mxu0 0.0
        %572 = vmatpush1.msra.mxu0 0.0
        %573 = vmatprep.subr.mxu0 0.0
        %574 = vmatpush1.msra.mxu0 0.0
        %575 = vmatprep.subr.mxu0 0.0
        %576 = vmatpush1.msra.mxu0 0.0
        %577 = vmatprep.subr.mxu0 0.0
        %578 = vmatpush1.msra.mxu0 0.0
        %579 = vmatprep.subr.mxu0 0.0
        %580 = vmatpush1.msra.mxu0 0.0
        %581 = vmatprep.subr.mxu0 0.0
        %582 = vmatpush1.msra.mxu0 0.0
        %583 = vmatprep.subr.mxu0 0.0
        %584 = vmatpush1.msra.mxu0 0.0
        %585 = vmatprep.subr.mxu0 0.0
        %586 = vmatpush1.msra.mxu0 0.0
        %587 = vmatprep.subr.mxu0 0.0
        %588 = vmatpush1.msra.mxu0 0.0
        %589 = vmatprep.subr.mxu0 0.0
        %590 = vmatpush1.msra.mxu0 0.0
        %591 = vmatprep.subr.mxu0 0.0
        %592 = vmatpush1.msra.mxu0 0.0
        %593 = vmatprep.subr.mxu0 0.0
        %594 = vmatpush1.msra.mxu0 0.0
        %595 = vmatprep.subr.mxu0 0.0
        %596 = vmatpush1.msra.mxu0 0.0
        %597 = vmatprep.subr.mxu0 0.0
        %598 = vmatpush1.msra.mxu0 0.0
        %599 = vmatprep.subr.mxu0 0.0
        %600 = vmatpush1.msra.mxu0 0.0
        %601 = vmatprep.subr.mxu0 0.0
        %602 = vmatpush1.msra.mxu0 0.0
        %603 = vmatprep.subr.mxu0 0.0
        %604 = vmatpush1.msra.mxu0 0.0
        %605 = vmatprep.subr.mxu0 0.0
        %606 = vmatpush1.msra.mxu0 0.0
        %607 = vmatprep.subr.mxu0 0.0
        %608 = vmatpush1.msra.mxu0 0.0
        %609 = vmatprep.subr.mxu0 0.0
        %610 = vmatpush1.msra.mxu0 0.0
        %611 = vmatprep.subr.mxu0 0.0
        %612 = vmatpush1.msra.mxu0 0.0
        %613 = vmatprep.mubr.f32.mxu0 0.0
        %614 = vmatmul.mubr.f32.gmra.mrb[0].mxu0 %v547
        %v615 = vpop.f32.mrb[0].mxu0
        %v616 = vadd.f32 0.0, %v615
        %v617 = vpop.f32.mrb[0].mxu0
        %618 = vdwg.mxu0
        %v620 = vsel %vm472, %v458, 0
        %622 = vmatprep.subr.mxu0 0.0
        %623 = vmatpush1.msra.mxu0 %v468
        %624 = vmatprep.subr.mxu0 0.0
        %625 = vmatpush1.msra.mxu0 %v469
        %626 = vmatprep.subr.mxu0 0.0
        %627 = vmatpush1.msra.mxu0 %v470
        %628 = vmatprep.subr.mxu0 0.0
        %629 = vmatpush1.msra.mxu0 %v471
        %630 = vmatprep.subr.mxu0 0.0
        %631 = vmatpush1.msra.mxu0 0.0
        %632 = vmatprep.subr.mxu0 0.0
        %633 = vmatpush1.msra.mxu0 0.0
        %634 = vmatprep.subr.mxu0 0.0
        %635 = vmatpush1.msra.mxu0 0.0
        %636 = vmatprep.subr.mxu0 0.0
        %637 = vmatpush1.msra.mxu0 0.0
        %638 = vmatprep.subr.mxu0 0.0
        %639 = vmatpush1.msra.mxu0 0.0
        %640 = vmatprep.subr.mxu0 0.0
        %641 = vmatpush1.msra.mxu0 0.0
        %642 = vmatprep.subr.mxu0 0.0
        %643 = vmatpush1.msra.mxu0 0.0
        %644 = vmatprep.subr.mxu0 0.0
        %645 = vmatpush1.msra.mxu0 0.0
        %646 = vmatprep.subr.mxu0 0.0
        %647 = vmatpush1.msra.mxu0 0.0
        %648 = vmatprep.subr.mxu0 0.0
        %649 = vmatpush1.msra.mxu0 0.0
        %650 = vmatprep.subr.mxu0 0.0
        %651 = vmatpush1.msra.mxu0 0.0
        %652 = vmatprep.subr.mxu0 0.0
        %653 = vmatpush1.msra.mxu0 0.0
        %654 = vmatprep.subr.mxu0 0.0
        %655 = vmatpush1.msra.mxu0 0.0
        %656 = vmatprep.subr.mxu0 0.0
        %657 = vmatpush1.msra.mxu0 0.0
        %658 = vmatprep.subr.mxu0 0.0
        %659 = vmatpush1.msra.mxu0 0.0
        %660 = vmatprep.subr.mxu0 0.0
        %661 = vmatpush1.msra.mxu0 0.0
        %662 = vmatprep.subr.mxu0 0.0
        %663 = vmatpush1.msra.mxu0 0.0
        %664 = vmatprep.subr.mxu0 0.0
        %665 = vmatpush1.msra.mxu0 0.0
        %666 = vmatprep.subr.mxu0 0.0
        %667 = vmatpush1.msra.mxu0 0.0
        %668 = vmatprep.subr.mxu0 0.0
        %669 = vmatpush1.msra.mxu0 0.0
        %670 = vmatprep.subr.mxu0 0.0
        %671 = vmatpush1.msra.mxu0 0.0
        %672 = vmatprep.subr.mxu0 0.0
        %673 = vmatpush1.msra.mxu0 0.0
        %674 = vmatprep.subr.mxu0 0.0
        %675 = vmatpush1.msra.mxu0 0.0
        %676 = vmatprep.subr.mxu0 0.0
        %677 = vmatpush1.msra.mxu0 0.0
        %678 = vmatprep.subr.mxu0 0.0
        %679 = vmatpush1.msra.mxu0 0.0
        %680 = vmatprep.subr.mxu0 0.0
        %681 = vmatpush1.msra.mxu0 0.0
        %682 = vmatprep.subr.mxu0 0.0
        %683 = vmatpush1.msra.mxu0 0.0
        %684 = vmatprep.subr.mxu0 0.0
        %685 = vmatpush1.msra.mxu0 0.0
        %686 = vmatprep.mubr.f32.mxu0 0.0
        %687 = vmatmul.mubr.f32.gmra.mrb[0].mxu0 %v620
        %v688 = vpop.f32.mrb[0].mxu0
        %v689 = vadd.f32 0.0, %v688
        %v690 = vpop.f32.mrb[0].mxu0
        %691 = vdwg.mxu0
        %vm692 = vcmask 130048
        %v694 = vsel %vm692, %v543, 0
        %v697 = vsel %vm692, %v616, 0
        %699 = vmatprep.subr.mxu0 0.0
        %700 = vmatpush1.xpose.msra.mxu0 %v697
        %701 = vmatprep.subr.mxu0 0.0
        %702 = vmatpush1.xpose.msra.mxu0 0.0
        %703 = vmatprep.subr.mxu0 0.0
        %704 = vmatpush1.xpose.msra.mxu0 0.0
        %705 = vmatprep.subr.mxu0 0.0
        %706 = vmatpush1.xpose.msra.mxu0 0.0
        %707 = vmatprep.subr.mxu0 0.0
        %708 = vmatpush1.xpose.msra.mxu0 0.0
        %709 = vmatprep.subr.mxu0 0.0
        %710 = vmatpush1.xpose.msra.mxu0 0.0
        %711 = vmatprep.subr.mxu0 0.0
        %712 = vmatpush1.xpose.msra.mxu0 0.0
        %713 = vmatprep.subr.mxu0 0.0
        %714 = vmatpush1.xpose.msra.mxu0 0.0
        %715 = vmatprep.subr.mxu0 0.0
        %716 = vmatpush1.xpose.msra.mxu0 0.0
        %717 = vmatprep.subr.mxu0 0.0
        %718 = vmatpush1.xpose.msra.mxu0 0.0
        %719 = vmatprep.subr.mxu0 0.0
        %720 = vmatpush1.xpose.msra.mxu0 0.0
        %721 = vmatprep.subr.mxu0 0.0
        %722 = vmatpush1.xpose.msra.mxu0 0.0
        %723 = vmatprep.subr.mxu0 0.0
        %724 = vmatpush1.xpose.msra.mxu0 0.0
        %725 = vmatprep.subr.mxu0 0.0
        %726 = vmatpush1.xpose.msra.mxu0 0.0
        %727 = vmatprep.subr.mxu0 0.0
        %728 = vmatpush1.xpose.msra.mxu0 0.0
        %729 = vmatprep.subr.mxu0 0.0
        %730 = vmatpush1.xpose.msra.mxu0 0.0
        %731 = vmatprep.subr.mxu0 0.0
        %732 = vmatpush1.xpose.msra.mxu0 0.0
        %733 = vmatprep.subr.mxu0 0.0
        %734 = vmatpush1.xpose.msra.mxu0 0.0
        %735 = vmatprep.subr.mxu0 0.0
        %736 = vmatpush1.xpose.msra.mxu0 0.0
        %737 = vmatprep.subr.mxu0 0.0
        %738 = vmatpush1.xpose.msra.mxu0 0.0
        %739 = vmatprep.subr.mxu0 0.0
        %740 = vmatpush1.xpose.msra.mxu0 0.0
        %741 = vmatprep.subr.mxu0 0.0
        %742 = vmatpush1.xpose.msra.mxu0 0.0
        %743 = vmatprep.subr.mxu0 0.0
        %744 = vmatpush1.xpose.msra.mxu0 0.0
        %745 = vmatprep.subr.mxu0 0.0
        %746 = vmatpush1.xpose.msra.mxu0 0.0
        %747 = vmatprep.subr.mxu0 0.0
        %748 = vmatpush1.xpose.msra.mxu0 0.0
        %749 = vmatprep.subr.mxu0 0.0
        %750 = vmatpush1.xpose.msra.mxu0 0.0
        %751 = vmatprep.subr.mxu0 0.0
        %752 = vmatpush1.xpose.msra.mxu0 0.0
        %753 = vmatprep.subr.mxu0 0.0
        %754 = vmatpush1.xpose.msra.mxu0 0.0
        %755 = vmatprep.subr.mxu0 0.0
        %756 = vmatpush1.xpose.msra.mxu0 0.0
        %757 = vmatprep.subr.mxu0 0.0
        %758 = vmatpush1.xpose.msra.mxu0 0.0
        %759 = vmatprep.subr.mxu0 0.0
        %760 = vmatpush1.xpose.msra.mxu0 0.0
        %761 = vmatprep.subr.mxu0 0.0
        %762 = vmatpush1.xpose.msra.mxu0 0.0
        %763 = vmatprep.mubr.f32.mxu0 0.0
        %764 = vmatmul.mubr.f32.gmra.mrb[0].mxu0 %v694
        %v765 = vpop.f32.mrb[0].mxu0
        %v766 = vadd.f32 0.0, %v765
        %v767 = vpop.f32.mrb[0].mxu0
        %768 = vdwg.mxu0
        %vm769 = vcmp.gt.f32.partialorder %v459, 0.0
        %v770 = vsel %vm769, 1e-09, %v766
        %v771 = vmul.f32 %v770, 0.25
        %vm772 = vcmask 64512
        %v773 = vsel %vm772, %v771, -inf
        %774 = vmax.xlane.f32.xlu0 %v773
        %v775 = vpop.xlane.xlu0 %774
        %v776 = vsub.f32 %v771, %v775
        %v777 = vmul.f32 %v776, 1.442695
        %v778 = vpow.pop %v777
        %v779 = vsel %vm772, %v778, 0.0
        %780 = vadd.xlane.f32.xlu0 %v779
        %v781 = vpop.xlane.xlu0 %780
        %v782 = vrcp.pop %v781
        %v783 = vmul.f32 %v778, %v782
        %v785 = vsel %vm772, %v783, 0
        %787 = vmatprep.subr.mxu0 0.0
        %788 = vmatpush1.msra.mxu0 %v689
        %789 = vmatprep.subr.mxu0 0.0
        %790 = vmatpush1.msra.mxu0 0.0
        %791 = vmatprep.subr.mxu0 0.0
        %792 = vmatpush1.msra.mxu0 0.0
        %793 = vmatprep.subr.mxu0 0.0
        %794 = vmatpush1.msra.mxu0 0.0
        %795 = vmatprep.subr.mxu0 0.0
        %796 = vmatpush1.msra.mxu0 0.0
        %797 = vmatprep.subr.mxu0 0.0
        %798 = vmatpush1.msra.mxu0 0.0
        %799 = vmatprep.subr.mxu0 0.0
        %800 = vmatpush1.msra.mxu0 0.0
        %801 = vmatprep.subr.mxu0 0.0
        %802 = vmatpush1.msra.mxu0 0.0
        %803 = vmatprep.subr.mxu0 0.0
        %804 = vmatpush1.msra.mxu0 0.0
        %805 = vmatprep.subr.mxu0 0.0
        %806 = vmatpush1.msra.mxu0 0.0
        %807 = vmatprep.subr.mxu0 0.0
        %808 = vmatpush1.msra.mxu0 0.0
        %809 = vmatprep.subr.mxu0 0.0
        %810 = vmatpush1.msra.mxu0 0.0
        %811 = vmatprep.subr.mxu0 0.0
        %812 = vmatpush1.msra.mxu0 0.0
        %813 = vmatprep.subr.mxu0 0.0
        %814 = vmatpush1.msra.mxu0 0.0
        %815 = vmatprep.subr.mxu0 0.0
        %816 = vmatpush1.msra.mxu0 0.0
        %817 = vmatprep.subr.mxu0 0.0
        %818 = vmatpush1.msra.mxu0 0.0
        %819 = vmatprep.subr.mxu0 0.0
        %820 = vmatpush1.msra.mxu0 0.0
        %821 = vmatprep.subr.mxu0 0.0
        %822 = vmatpush1.msra.mxu0 0.0
        %823 = vmatprep.subr.mxu0 0.0
        %824 = vmatpush1.msra.mxu0 0.0
        %825 = vmatprep.subr.mxu0 0.0
        %826 = vmatpush1.msra.mxu0 0.0
        %827 = vmatprep.subr.mxu0 0.0
        %828 = vmatpush1.msra.mxu0 0.0
        %829 = vmatprep.subr.mxu0 0.0
        %830 = vmatpush1.msra.mxu0 0.0
        %831 = vmatprep.subr.mxu0 0.0
        %832 = vmatpush1.msra.mxu0 0.0
        %833 = vmatprep.subr.mxu0 0.0
        %834 = vmatpush1.msra.mxu0 0.0
        %835 = vmatprep.subr.mxu0 0.0
        %836 = vmatpush1.msra.mxu0 0.0
        %837 = vmatprep.subr.mxu0 0.0
        %838 = vmatpush1.msra.mxu0 0.0
        %839 = vmatprep.subr.mxu0 0.0
        %840 = vmatpush1.msra.mxu0 0.0
        %841 = vmatprep.subr.mxu0 0.0
        %842 = vmatpush1.msra.mxu0 0.0
        %843 = vmatprep.subr.mxu0 0.0
        %844 = vmatpush1.msra.mxu0 0.0
        %845 = vmatprep.subr.mxu0 0.0
        %846 = vmatpush1.msra.mxu0 0.0
        %847 = vmatprep.subr.mxu0 0.0
        %848 = vmatpush1.msra.mxu0 0.0
        %849 = vmatprep.subr.mxu0 0.0
        %850 = vmatpush1.msra.mxu0 0.0
        %851 = vmatprep.mubr.f32.mxu0 0.0
        %852 = vmatmul.mubr.f32.gmra.mrb[0].mxu0 %v785
        %v853 = vpop.f32.mrb[0].mxu0
        %v854 = vadd.f32 0.0, %v853
        %v855 = vpop.f32.mrb[0].mxu0
        %856 = vdwg.mxu0
        %857 = vrot.lane.b32.xlu0 %v543, 112
        %v858 = vpop.permute.xlu0 %857
        %859 = vrot.lane.b32.xlu0 %v616, 112
        %v860 = vpop.permute.xlu0 %859
        %v861 = vsel %vm692, %v858, 0
        %v863 = vsel %vm692, %v860, 0
        %865 = vmatprep.subr.mxu0 0.0
        %866 = vmatpush1.xpose.msra.mxu0 %v863
        %867 = vmatprep.subr.mxu0 0.0
        %868 = vmatpush1.xpose.msra.mxu0 0.0
        %869 = vmatprep.subr.mxu0 0.0
        %870 = vmatpush1.xpose.msra.mxu0 0.0
        %871 = vmatprep.subr.mxu0 0.0
        %872 = vmatpush1.xpose.msra.mxu0 0.0
        %873 = vmatprep.subr.mxu0 0.0
        %874 = vmatpush1.xpose.msra.mxu0 0.0
        %875 = vmatprep.subr.mxu0 0.0
        %876 = vmatpush1.xpose.msra.mxu0 0.0
        %877 = vmatprep.subr.mxu0 0.0
        %878 = vmatpush1.xpose.msra.mxu0 0.0
        %879 = vmatprep.subr.mxu0 0.0
        %880 = vmatpush1.xpose.msra.mxu0 0.0
        %881 = vmatprep.subr.mxu0 0.0
        %882 = vmatpush1.xpose.msra.mxu0 0.0
        %883 = vmatprep.subr.mxu0 0.0
        %884 = vmatpush1.xpose.msra.mxu0 0.0
        %885 = vmatprep.subr.mxu0 0.0
        %886 = vmatpush1.xpose.msra.mxu0 0.0
        %887 = vmatprep.subr.mxu0 0.0
        %888 = vmatpush1.xpose.msra.mxu0 0.0
        %889 = vmatprep.subr.mxu0 0.0
        %890 = vmatpush1.xpose.msra.mxu0 0.0
        %891 = vmatprep.subr.mxu0 0.0
        %892 = vmatpush1.xpose.msra.mxu0 0.0
        %893 = vmatprep.subr.mxu0 0.0
        %894 = vmatpush1.xpose.msra.mxu0 0.0
        %895 = vmatprep.subr.mxu0 0.0
        %896 = vmatpush1.xpose.msra.mxu0 0.0
        %897 = vmatprep.subr.mxu0 0.0
        %898 = vmatpush1.xpose.msra.mxu0 0.0
        %899 = vmatprep.subr.mxu0 0.0
        %900 = vmatpush1.xpose.msra.mxu0 0.0
        %901 = vmatprep.subr.mxu0 0.0
        %902 = vmatpush1.xpose.msra.mxu0 0.0
        %903 = vmatprep.subr.mxu0 0.0
        %904 = vmatpush1.xpose.msra.mxu0 0.0
        %905 = vmatprep.subr.mxu0 0.0
        %906 = vmatpush1.xpose.msra.mxu0 0.0
        %907 = vmatprep.subr.mxu0 0.0
        %908 = vmatpush1.xpose.msra.mxu0 0.0
        %909 = vmatprep.subr.mxu0 0.0
        %910 = vmatpush1.xpose.msra.mxu0 0.0
        %911 = vmatprep.subr.mxu0 0.0
        %912 = vmatpush1.xpose.msra.mxu0 0.0
        %913 = vmatprep.subr.mxu0 0.0
        %914 = vmatpush1.xpose.msra.mxu0 0.0
        %915 = vmatprep.subr.mxu0 0.0
        %916 = vmatpush1.xpose.msra.mxu0 0.0
        %917 = vmatprep.subr.mxu0 0.0
        %918 = vmatpush1.xpose.msra.mxu0 0.0
        %919 = vmatprep.subr.mxu0 0.0
        %920 = vmatpush1.xpose.msra.mxu0 0.0
        %921 = vmatprep.subr.mxu0 0.0
        %922 = vmatpush1.xpose.msra.mxu0 0.0
        %923 = vmatprep.subr.mxu0 0.0
        %924 = vmatpush1.xpose.msra.mxu0 0.0
        %925 = vmatprep.subr.mxu0 0.0
        %926 = vmatpush1.xpose.msra.mxu0 0.0
        %927 = vmatprep.subr.mxu0 0.0
        %928 = vmatpush1.xpose.msra.mxu0 0.0
        %929 = vmatprep.mubr.f32.mxu0 0.0
        %930 = vmatmul.mubr.f32.gmra.mrb[0].mxu0 %v861
        %v931 = vpop.f32.mrb[0].mxu0
        %v932 = vadd.f32 0.0, %v931
        %v933 = vpop.f32.mrb[0].mxu0
        %934 = vdwg.mxu0
        %v935 = vsel %vm769, 1e-09, %v932
        %v936 = vmul.f32 %v935, 0.25
        %v937 = vsel %vm772, %v936, -inf
        %938 = vmax.xlane.f32.xlu0 %v937
        %v939 = vpop.xlane.xlu0 %938
        %v940 = vsub.f32 %v936, %v939
        %v941 = vmul.f32 %v940, 1.442695
        %v942 = vpow.pop %v941
        %v943 = vsel %vm772, %v942, 0.0
        %944 = vadd.xlane.f32.xlu0 %v943
        %v945 = vpop.xlane.xlu0 %944
        %v946 = vrcp.pop %v945
        %v947 = vmul.f32 %v942, %v946
        %949 = vrot.lane.b32.xlu0 %v689, 112
        %v950 = vpop.permute.xlu0 %949
        %v953 = vsel %vm772, %v947, 0
        %955 = vmatprep.subr.mxu0 0.0
        %956 = vmatpush1.msra.mxu0 %v950
        %957 = vmatprep.subr.mxu0 0.0
        %958 = vmatpush1.msra.mxu0 0.0
        %959 = vmatprep.subr.mxu0 0.0
        %960 = vmatpush1.msra.mxu0 0.0
        %961 = vmatprep.subr.mxu0 0.0
        %962 = vmatpush1.msra.mxu0 0.0
        %963 = vmatprep.subr.mxu0 0.0
        %964 = vmatpush1.msra.mxu0 0.0
        %965 = vmatprep.subr.mxu0 0.0
        %966 = vmatpush1.msra.mxu0 0.0
        %967 = vmatprep.subr.mxu0 0.0
        %968 = vmatpush1.msra.mxu0 0.0
        %969 = vmatprep.subr.mxu0 0.0
        %970 = vmatpush1.msra.mxu0 0.0
        %971 = vmatprep.subr.mxu0 0.0
        %972 = vmatpush1.msra.mxu0 0.0
        %973 = vmatprep.subr.mxu0 0.0
        %974 = vmatpush1.msra.mxu0 0.0
        %975 = vmatprep.subr.mxu0 0.0
        %976 = vmatpush1.msra.mxu0 0.0
        %977 = vmatprep.subr.mxu0 0.0
        %978 = vmatpush1.msra.mxu0 0.0
        %979 = vmatprep.subr.mxu0 0.0
        %980 = vmatpush1.msra.mxu0 0.0
        %981 = vmatprep.subr.mxu0 0.0
        %982 = vmatpush1.msra.mxu0 0.0
        %983 = vmatprep.subr.mxu0 0.0
        %984 = vmatpush1.msra.mxu0 0.0
        %985 = vmatprep.subr.mxu0 0.0
        %986 = vmatpush1.msra.mxu0 0.0
        %987 = vmatprep.subr.mxu0 0.0
        %988 = vmatpush1.msra.mxu0 0.0
        %989 = vmatprep.subr.mxu0 0.0
        %990 = vmatpush1.msra.mxu0 0.0
        %991 = vmatprep.subr.mxu0 0.0
        %992 = vmatpush1.msra.mxu0 0.0
        %993 = vmatprep.subr.mxu0 0.0
        %994 = vmatpush1.msra.mxu0 0.0
        %995 = vmatprep.subr.mxu0 0.0
        %996 = vmatpush1.msra.mxu0 0.0
        %997 = vmatprep.subr.mxu0 0.0
        %998 = vmatpush1.msra.mxu0 0.0
        %999 = vmatprep.subr.mxu0 0.0
        %1000 = vmatpush1.msra.mxu0 0.0
        %1001 = vmatprep.subr.mxu0 0.0
        %1002 = vmatpush1.msra.mxu0 0.0
        %1003 = vmatprep.subr.mxu0 0.0
        %1004 = vmatpush1.msra.mxu0 0.0
        %1005 = vmatprep.subr.mxu0 0.0
        %1006 = vmatpush1.msra.mxu0 0.0
        %1007 = vmatprep.subr.mxu0 0.0
        %1008 = vmatpush1.msra.mxu0 0.0
        %1009 = vmatprep.subr.mxu0 0.0
        %1010 = vmatpush1.msra.mxu0 0.0
        %1011 = vmatprep.subr.mxu0 0.0
        %1012 = vmatpush1.msra.mxu0 0.0
        %1013 = vmatprep.subr.mxu0 0.0
        %1014 = vmatpush1.msra.mxu0 0.0
        %1015 = vmatprep.subr.mxu0 0.0
        %1016 = vmatpush1.msra.mxu0 0.0
        %1017 = vmatprep.subr.mxu0 0.0
        %1018 = vmatpush1.msra.mxu0 0.0
        %1019 = vmatprep.mubr.f32.mxu0 0.0
        %1020 = vmatmul.mubr.f32.gmra.mrb[0].mxu0 %v953
        %v1021 = vpop.f32.mrb[0].mxu0
        %v1022 = vadd.f32 0.0, %v1021
        %v1023 = vpop.f32.mrb[0].mxu0
        %1024 = vdwg.mxu0
        %1025 = vrot.lane.b32.xlu0 %v543, 96
        %v1026 = vpop.permute.xlu0 %1025
        %1027 = vrot.lane.b32.xlu0 %v616, 96
        %v1028 = vpop.permute.xlu0 %1027
        %v1029 = vsel %vm692, %v1026, 0
        %v1031 = vsel %vm692, %v1028, 0
        %1033 = vmatprep.subr.mxu0 0.0
        %1034 = vmatpush1.xpose.msra.mxu0 %v1031
        %1035 = vmatprep.subr.mxu0 0.0
        %1036 = vmatpush1.xpose.msra.mxu0 0.0
        %1037 = vmatprep.subr.mxu0 0.0
        %1038 = vmatpush1.xpose.msra.mxu0 0.0
        %1039 = vmatprep.subr.mxu0 0.0
        %1040 = vmatpush1.xpose.msra.mxu0 0.0
        %1041 = vmatprep.subr.mxu0 0.0
        %1042 = vmatpush1.xpose.msra.mxu0 0.0
        %1043 = vmatprep.subr.mxu0 0.0
        %1044 = vmatpush1.xpose.msra.mxu0 0.0
        %1045 = vmatprep.subr.mxu0 0.0
        %1046 = vmatpush1.xpose.msra.mxu0 0.0
        %1047 = vmatprep.subr.mxu0 0.0
        %1048 = vmatpush1.xpose.msra.mxu0 0.0
        %1049 = vmatprep.subr.mxu0 0.0
        %1050 = vmatpush1.xpose.msra.mxu0 0.0
        %1051 = vmatprep.subr.mxu0 0.0
        %1052 = vmatpush1.xpose.msra.mxu0 0.0
        %1053 = vmatprep.subr.mxu0 0.0
        %1054 = vmatpush1.xpose.msra.mxu0 0.0
        %1055 = vmatprep.subr.mxu0 0.0
        %1056 = vmatpush1.xpose.msra.mxu0 0.0
        %1057 = vmatprep.subr.mxu0 0.0
        %1058 = vmatpush1.xpose.msra.mxu0 0.0
        %1059 = vmatprep.subr.mxu0 0.0
        %1060 = vmatpush1.xpose.msra.mxu0 0.0
        %1061 = vmatprep.subr.mxu0 0.0
        %1062 = vmatpush1.xpose.msra.mxu0 0.0
        %1063 = vmatprep.subr.mxu0 0.0
        %1064 = vmatpush1.xpose.msra.mxu0 0.0
        %1065 = vmatprep.subr.mxu0 0.0
        %1066 = vmatpush1.xpose.msra.mxu0 0.0
        %1067 = vmatprep.subr.mxu0 0.0
        %1068 = vmatpush1.xpose.msra.mxu0 0.0
        %1069 = vmatprep.subr.mxu0 0.0
        %1070 = vmatpush1.xpose.msra.mxu0 0.0
        %1071 = vmatprep.subr.mxu0 0.0
        %1072 = vmatpush1.xpose.msra.mxu0 0.0
        %1073 = vmatprep.subr.mxu0 0.0
        %1074 = vmatpush1.xpose.msra.mxu0 0.0
        %1075 = vmatprep.subr.mxu0 0.0
        %1076 = vmatpush1.xpose.msra.mxu0 0.0
        %1077 = vmatprep.subr.mxu0 0.0
        %1078 = vmatpush1.xpose.msra.mxu0 0.0
        %1079 = vmatprep.subr.mxu0 0.0
        %1080 = vmatpush1.xpose.msra.mxu0 0.0
        %1081 = vmatprep.subr.mxu0 0.0
        %1082 = vmatpush1.xpose.msra.mxu0 0.0
        %1083 = vmatprep.subr.mxu0 0.0
        %1084 = vmatpush1.xpose.msra.mxu0 0.0
        %1085 = vmatprep.subr.mxu0 0.0
        %1086 = vmatpush1.xpose.msra.mxu0 0.0
        %1087 = vmatprep.subr.mxu0 0.0
        %1088 = vmatpush1.xpose.msra.mxu0 0.0
        %1089 = vmatprep.subr.mxu0 0.0
        %1090 = vmatpush1.xpose.msra.mxu0 0.0
        %1091 = vmatprep.subr.mxu0 0.0
        %1092 = vmatpush1.xpose.msra.mxu0 0.0
        %1093 = vmatprep.subr.mxu0 0.0
        %1094 = vmatpush1.xpose.msra.mxu0 0.0
        %1095 = vmatprep.subr.mxu0 0.0
        %1096 = vmatpush1.xpose.msra.mxu0 0.0
        %1097 = vmatprep.mubr.f32.mxu0 0.0
        %1098 = vmatmul.mubr.f32.gmra.mrb[0].mxu0 %v1029
        %v1099 = vpop.f32.mrb[0].mxu0
        %v1100 = vadd.f32 0.0, %v1099
        %v1101 = vpop.f32.mrb[0].mxu0
        %1102 = vdwg.mxu0
        %v1103 = vsel %vm769, 1e-09, %v1100
        %v1104 = vmul.f32 %v1103, 0.25
        %v1105 = vsel %vm772, %v1104, -inf
        %1106 = vmax.xlane.f32.xlu0 %v1105
        %v1107 = vpop.xlane.xlu0 %1106
        %v1108 = vsub.f32 %v1104, %v1107
        %v1109 = vmul.f32 %v1108, 1.442695
        %v1110 = vpow.pop %v1109
        %v1111 = vsel %vm772, %v1110, 0.0
        %1112 = vadd.xlane.f32.xlu0 %v1111
        %v1113 = vpop.xlane.xlu0 %1112
        %v1114 = vrcp.pop %v1113
        %v1115 = vmul.f32 %v1110, %v1114
        %1116 = vrot.lane.b32.xlu0 %v689, 96
        %v1117 = vpop.permute.xlu0 %1116
        %v1120 = vsel %vm772, %v1115, 0
        %1122 = vmatprep.subr.mxu0 0.0
        %1123 = vmatpush1.msra.mxu0 %v1117
        %1124 = vmatprep.subr.mxu0 0.0
        %1125 = vmatpush1.msra.mxu0 0.0
        %1126 = vmatprep.subr.mxu0 0.0
        %1127 = vmatpush1.msra.mxu0 0.0
        %1128 = vmatprep.subr.mxu0 0.0
        %1129 = vmatpush1.msra.mxu0 0.0
        %1130 = vmatprep.subr.mxu0 0.0
        %1131 = vmatpush1.msra.mxu0 0.0
        %1132 = vmatprep.subr.mxu0 0.0
        %1133 = vmatpush1.msra.mxu0 0.0
        %1134 = vmatprep.subr.mxu0 0.0
        %1135 = vmatpush1.msra.mxu0 0.0
        %1136 = vmatprep.subr.mxu0 0.0
        %1137 = vmatpush1.msra.mxu0 0.0
        %1138 = vmatprep.subr.mxu0 0.0
        %1139 = vmatpush1.msra.mxu0 0.0
        %1140 = vmatprep.subr.mxu0 0.0
        %1141 = vmatpush1.msra.mxu0 0.0
        %1142 = vmatprep.subr.mxu0 0.0
        %1143 = vmatpush1.msra.mxu0 0.0
        %1144 = vmatprep.subr.mxu0 0.0
        %1145 = vmatpush1.msra.mxu0 0.0
        %1146 = vmatprep.subr.mxu0 0.0
        %1147 = vmatpush1.msra.mxu0 0.0
        %1148 = vmatprep.subr.mxu0 0.0
        %1149 = vmatpush1.msra.mxu0 0.0
        %1150 = vmatprep.subr.mxu0 0.0
        %1151 = vmatpush1.msra.mxu0 0.0
        %1152 = vmatprep.subr.mxu0 0.0
        %1153 = vmatpush1.msra.mxu0 0.0
        %1154 = vmatprep.subr.mxu0 0.0
        %1155 = vmatpush1.msra.mxu0 0.0
        %1156 = vmatprep.subr.mxu0 0.0
        %1157 = vmatpush1.msra.mxu0 0.0
        %1158 = vmatprep.subr.mxu0 0.0
        %1159 = vmatpush1.msra.mxu0 0.0
        %1160 = vmatprep.subr.mxu0 0.0
        %1161 = vmatpush1.msra.mxu0 0.0
        %1162 = vmatprep.subr.mxu0 0.0
        %1163 = vmatpush1.msra.mxu0 0.0
        %1164 = vmatprep.subr.mxu0 0.0
        %1165 = vmatpush1.msra.mxu0 0.0
        %1166 = vmatprep.subr.mxu0 0.0
        %1167 = vmatpush1.msra.mxu0 0.0
        %1168 = vmatprep.subr.mxu0 0.0
        %1169 = vmatpush1.msra.mxu0 0.0
        %1170 = vmatprep.subr.mxu0 0.0
        %1171 = vmatpush1.msra.mxu0 0.0
        %1172 = vmatprep.subr.mxu0 0.0
        %1173 = vmatpush1.msra.mxu0 0.0
        %1174 = vmatprep.subr.mxu0 0.0
        %1175 = vmatpush1.msra.mxu0 0.0
        %1176 = vmatprep.subr.mxu0 0.0
        %1177 = vmatpush1.msra.mxu0 0.0
        %1178 = vmatprep.subr.mxu0 0.0
        %1179 = vmatpush1.msra.mxu0 0.0
        %1180 = vmatprep.subr.mxu0 0.0
        %1181 = vmatpush1.msra.mxu0 0.0
        %1182 = vmatprep.subr.mxu0 0.0
        %1183 = vmatpush1.msra.mxu0 0.0
        %1184 = vmatprep.subr.mxu0 0.0
        %1185 = vmatpush1.msra.mxu0 0.0
        %1186 = vmatprep.mubr.f32.mxu0 0.0
        %1187 = vmatmul.mubr.f32.gmra.mrb[0].mxu0 %v1120
        %v1188 = vpop.f32.mrb[0].mxu0
        %v1189 = vadd.f32 0.0, %v1188
        %v1190 = vpop.f32.mrb[0].mxu0
        %1191 = vdwg.mxu0
        %1192 = vrot.lane.b32.xlu0 %v543, 80
        %v1193 = vpop.permute.xlu0 %1192
        %1194 = vrot.lane.b32.xlu0 %v616, 80
        %v1195 = vpop.permute.xlu0 %1194
        %v1196 = vsel %vm692, %v1193, 0
        %v1198 = vsel %vm692, %v1195, 0
        %1200 = vmatprep.subr.mxu0 0.0
        %1201 = vmatpush1.xpose.msra.mxu0 %v1198
        %1202 = vmatprep.subr.mxu0 0.0
        %1203 = vmatpush1.xpose.msra.mxu0 0.0
        %1204 = vmatprep.subr.mxu0 0.0
        %1205 = vmatpush1.xpose.msra.mxu0 0.0
        %1206 = vmatprep.subr.mxu0 0.0
        %1207 = vmatpush1.xpose.msra.mxu0 0.0
        %1208 = vmatprep.subr.mxu0 0.0
        %1209 = vmatpush1.xpose.msra.mxu0 0.0
        %1210 = vmatprep.subr.mxu0 0.0
        %1211 = vmatpush1.xpose.msra.mxu0 0.0
        %1212 = vmatprep.subr.mxu0 0.0
        %1213 = vmatpush1.xpose.msra.mxu0 0.0
        %1214 = vmatprep.subr.mxu0 0.0
        %1215 = vmatpush1.xpose.msra.mxu0 0.0
        %1216 = vmatprep.subr.mxu0 0.0
        %1217 = vmatpush1.xpose.msra.mxu0 0.0
        %1218 = vmatprep.subr.mxu0 0.0
        %1219 = vmatpush1.xpose.msra.mxu0 0.0
        %1220 = vmatprep.subr.mxu0 0.0
        %1221 = vmatpush1.xpose.msra.mxu0 0.0
        %1222 = vmatprep.subr.mxu0 0.0
        %1223 = vmatpush1.xpose.msra.mxu0 0.0
        %1224 = vmatprep.subr.mxu0 0.0
        %1225 = vmatpush1.xpose.msra.mxu0 0.0
        %1226 = vmatprep.subr.mxu0 0.0
        %1227 = vmatpush1.xpose.msra.mxu0 0.0
        %1228 = vmatprep.subr.mxu0 0.0
        %1229 = vmatpush1.xpose.msra.mxu0 0.0
        %1230 = vmatprep.subr.mxu0 0.0
        %1231 = vmatpush1.xpose.msra.mxu0 0.0
        %1232 = vmatprep.subr.mxu0 0.0
        %1233 = vmatpush1.xpose.msra.mxu0 0.0
        %1234 = vmatprep.subr.mxu0 0.0
        %1235 = vmatpush1.xpose.msra.mxu0 0.0
        %1236 = vmatprep.subr.mxu0 0.0
        %1237 = vmatpush1.xpose.msra.mxu0 0.0
        %1238 = vmatprep.subr.mxu0 0.0
        %1239 = vmatpush1.xpose.msra.mxu0 0.0
        %1240 = vmatprep.subr.mxu0 0.0
        %1241 = vmatpush1.xpose.msra.mxu0 0.0
        %1242 = vmatprep.subr.mxu0 0.0
        %1243 = vmatpush1.xpose.msra.mxu0 0.0
        %1244 = vmatprep.subr.mxu0 0.0
        %1245 = vmatpush1.xpose.msra.mxu0 0.0
        %1246 = vmatprep.subr.mxu0 0.0
        %1247 = vmatpush1.xpose.msra.mxu0 0.0
        %1248 = vmatprep.subr.mxu0 0.0
        %1249 = vmatpush1.xpose.msra.mxu0 0.0
        %1250 = vmatprep.subr.mxu0 0.0
        %1251 = vmatpush1.xpose.msra.mxu0 0.0
        %1252 = vmatprep.subr.mxu0 0.0
        %1253 = vmatpush1.xpose.msra.mxu0 0.0
        %1254 = vmatprep.subr.mxu0 0.0
        %1255 = vmatpush1.xpose.msra.mxu0 0.0
        %1256 = vmatprep.subr.mxu0 0.0
        %1257 = vmatpush1.xpose.msra.mxu0 0.0
        %1258 = vmatprep.subr.mxu0 0.0
        %1259 = vmatpush1.xpose.msra.mxu0 0.0
        %1260 = vmatprep.subr.mxu0 0.0
        %1261 = vmatpush1.xpose.msra.mxu0 0.0
        %1262 = vmatprep.subr.mxu0 0.0
        %1263 = vmatpush1.xpose.msra.mxu0 0.0
        %1264 = vmatprep.mubr.f32.mxu0 0.0
        %1265 = vmatmul.mubr.f32.gmra.mrb[0].mxu0 %v1196
        %v1266 = vpop.f32.mrb[0].mxu0
        %v1267 = vadd.f32 0.0, %v1266
        %v1268 = vpop.f32.mrb[0].mxu0
        %1269 = vdwg.mxu0
        %v1270 = vsel %vm769, 1e-09, %v1267
        %v1271 = vmul.f32 %v1270, 0.25
        %v1272 = vsel %vm772, %v1271, -inf
        %1273 = vmax.xlane.f32.xlu0 %v1272
        %v1274 = vpop.xlane.xlu0 %1273
        %v1275 = vsub.f32 %v1271, %v1274
        %v1276 = vmul.f32 %v1275, 1.442695
        %v1277 = vpow.pop %v1276
        %v1278 = vsel %vm772, %v1277, 0.0
        %1279 = vadd.xlane.f32.xlu0 %v1278
        %v1280 = vpop.xlane.xlu0 %1279
        %v1281 = vrcp.pop %v1280
        %v1282 = vmul.f32 %v1277, %v1281
        %1283 = vrot.lane.b32.xlu0 %v689, 80
        %v1284 = vpop.permute.xlu0 %1283
        %v1287 = vsel %vm772, %v1282, 0
        %1289 = vmatprep.subr.mxu0 0.0
        %1290 = vmatpush1.msra.mxu0 %v1284
        %1291 = vmatprep.subr.mxu0 0.0
        %1292 = vmatpush1.msra.mxu0 0.0
        %1293 = vmatprep.subr.mxu0 0.0
        %1294 = vmatpush1.msra.mxu0 0.0
        %1295 = vmatprep.subr.mxu0 0.0
        %1296 = vmatpush1.msra.mxu0 0.0
        %1297 = vmatprep.subr.mxu0 0.0
        %1298 = vmatpush1.msra.mxu0 0.0
        %1299 = vmatprep.subr.mxu0 0.0
        %1300 = vmatpush1.msra.mxu0 0.0
        %1301 = vmatprep.subr.mxu0 0.0
        %1302 = vmatpush1.msra.mxu0 0.0
        %1303 = vmatprep.subr.mxu0 0.0
        %1304 = vmatpush1.msra.mxu0 0.0
        %1305 = vmatprep.subr.mxu0 0.0
        %1306 = vmatpush1.msra.mxu0 0.0
        %1307 = vmatprep.subr.mxu0 0.0
        %1308 = vmatpush1.msra.mxu0 0.0
        %1309 = vmatprep.subr.mxu0 0.0
        %1310 = vmatpush1.msra.mxu0 0.0
        %1311 = vmatprep.subr.mxu0 0.0
        %1312 = vmatpush1.msra.mxu0 0.0
        %1313 = vmatprep.subr.mxu0 0.0
        %1314 = vmatpush1.msra.mxu0 0.0
        %1315 = vmatprep.subr.mxu0 0.0
        %1316 = vmatpush1.msra.mxu0 0.0
        %1317 = vmatprep.subr.mxu0 0.0
        %1318 = vmatpush1.msra.mxu0 0.0
        %1319 = vmatprep.subr.mxu0 0.0
        %1320 = vmatpush1.msra.mxu0 0.0
        %1321 = vmatprep.subr.mxu0 0.0
        %1322 = vmatpush1.msra.mxu0 0.0
        %1323 = vmatprep.subr.mxu0 0.0
        %1324 = vmatpush1.msra.mxu0 0.0
        %1325 = vmatprep.subr.mxu0 0.0
        %1326 = vmatpush1.msra.mxu0 0.0
        %1327 = vmatprep.subr.mxu0 0.0
        %1328 = vmatpush1.msra.mxu0 0.0
        %1329 = vmatprep.subr.mxu0 0.0
        %1330 = vmatpush1.msra.mxu0 0.0
        %1331 = vmatprep.subr.mxu0 0.0
        %1332 = vmatpush1.msra.mxu0 0.0
        %1333 = vmatprep.subr.mxu0 0.0
        %1334 = vmatpush1.msra.mxu0 0.0
        %1335 = vmatprep.subr.mxu0 0.0
        %1336 = vmatpush1.msra.mxu0 0.0
        %1337 = vmatprep.subr.mxu0 0.0
        %1338 = vmatpush1.msra.mxu0 0.0
        %1339 = vmatprep.subr.mxu0 0.0
        %1340 = vmatpush1.msra.mxu0 0.0
        %1341 = vmatprep.subr.mxu0 0.0
        %1342 = vmatpush1.msra.mxu0 0.0
        %1343 = vmatprep.subr.mxu0 0.0
        %1344 = vmatpush1.msra.mxu0 0.0
        %1345 = vmatprep.subr.mxu0 0.0
        %1346 = vmatpush1.msra.mxu0 0.0
        %1347 = vmatprep.subr.mxu0 0.0
        %1348 = vmatpush1.msra.mxu0 0.0
        %1349 = vmatprep.subr.mxu0 0.0
        %1350 = vmatpush1.msra.mxu0 0.0
        %1351 = vmatprep.subr.mxu0 0.0
        %1352 = vmatpush1.msra.mxu0 0.0
        %1353 = vmatprep.mubr.f32.mxu0 0.0
        %1354 = vmatmul.mubr.f32.gmra.mrb[0].mxu0 %v1287
        %v1355 = vpop.f32.mrb[0].mxu0
        %v1356 = vadd.f32 0.0, %v1355
        %v1357 = vpop.f32.mrb[0].mxu0
        %1358 = vdwg.mxu0
        %1360 = vrot.lane.b32.xlu0 %v1022, 16
        %v1361 = vpop.permute.xlu0 %1360
        %1364 = vrot.lane.b32.xlu0 %v1189, 32
        %v1365 = vpop.permute.xlu0 %1364
        %1368 = vrot.lane.b32.xlu0 %v1356, 48
        %v1369 = vpop.permute.xlu0 %1368
        %v1371 = vsel %vm692, %v854, %v1361
        %v1372 = vsel %vm472, %v1371, %v1365
        %vm1373 = vcmask 392192
        %v1374 = vsel %vm1373, %v1372, %v1369
        %v1375 = vld [vmem:[%s7] sm:$0xff]
        %v1376 = vld [vmem:[%s7 + $0x8] sm:$0xff]
        %v1377 = vld [vmem:[%s7 + $0x10] sm:$0xff]
        %v1378 = vld [vmem:[%s7 + $0x18] sm:$0xff]
        %v1379 = vld [vmem:[%s7 + $0x20] sm:$0xff]
        %v1380 = vld [vmem:[%s7 + $0x28] sm:$0xff]
        %v1381 = vld [vmem:[%s7 + $0x30] sm:$0xff]
        %v1382 = vld [vmem:[%s7 + $0x38] sm:$0xff]
        %v1383 = vld [vmem:[%s8] sm:$0x1]
        %v1385 = vlaneseq
        %v1386 = vshrl.u32 %v1385, 7
        %v1387 = vsub.s32 0, %v1386
        %v1388 = vrot.slane %v1383, %v1387
        %vm1390 = vcmask 523264
        %v1392 = vsel %vm1390, %v1374, 0
        %1394 = vmatprep.subr.mxu0 0.0
        %1395 = vmatpush1.msra.mxu0 %v1375
        %1396 = vmatprep.subr.mxu0 0.0
        %1397 = vmatpush1.msra.mxu0 %v1376
        %1398 = vmatprep.subr.mxu0 0.0
        %1399 = vmatpush1.msra.mxu0 %v1377
        %1400 = vmatprep.subr.mxu0 0.0
        %1401 = vmatpush1.msra.mxu0 %v1378
        %1402 = vmatprep.subr.mxu0 0.0
        %1403 = vmatpush1.msra.mxu0 %v1379
        %1404 = vmatprep.subr.mxu0 0.0
        %1405 = vmatpush1.msra.mxu0 %v1380
        %1406 = vmatprep.subr.mxu0 0.0
        %1407 = vmatpush1.msra.mxu0 %v1381
        %1408 = vmatprep.subr.mxu0 0.0
        %1409 = vmatpush1.msra.mxu0 %v1382
        %1410 = vmatprep.subr.mxu0 0.0
        %1411 = vmatpush1.msra.mxu0 0.0
        %1412 = vmatprep.subr.mxu0 0.0
        %1413 = vmatpush1.msra.mxu0 0.0
        %1414 = vmatprep.subr.mxu0 0.0
        %1415 = vmatpush1.msra.mxu0 0.0
        %1416 = vmatprep.subr.mxu0 0.0
        %1417 = vmatpush1.msra.mxu0 0.0
        %1418 = vmatprep.subr.mxu0 0.0
        %1419 = vmatpush1.msra.mxu0 0.0
        %1420 = vmatprep.subr.mxu0 0.0
        %1421 = vmatpush1.msra.mxu0 0.0
        %1422 = vmatprep.subr.mxu0 0.0
        %1423 = vmatpush1.msra.mxu0 0.0
        %1424 = vmatprep.subr.mxu0 0.0
        %1425 = vmatpush1.msra.mxu0 0.0
        %1426 = vmatprep.subr.mxu0 0.0
        %1427 = vmatpush1.msra.mxu0 0.0
        %1428 = vmatprep.subr.mxu0 0.0
        %1429 = vmatpush1.msra.mxu0 0.0
        %1430 = vmatprep.subr.mxu0 0.0
        %1431 = vmatpush1.msra.mxu0 0.0
        %1432 = vmatprep.subr.mxu0 0.0
        %1433 = vmatpush1.msra.mxu0 0.0
        %1434 = vmatprep.subr.mxu0 0.0
        %1435 = vmatpush1.msra.mxu0 0.0
        %1436 = vmatprep.subr.mxu0 0.0
        %1437 = vmatpush1.msra.mxu0 0.0
        %1438 = vmatprep.subr.mxu0 0.0
        %1439 = vmatpush1.msra.mxu0 0.0
        %1440 = vmatprep.subr.mxu0 0.0
        %1441 = vmatpush1.msra.mxu0 0.0
        %1442 = vmatprep.subr.mxu0 0.0
        %1443 = vmatpush1.msra.mxu0 0.0
        %1444 = vmatprep.subr.mxu0 0.0
        %1445 = vmatpush1.msra.mxu0 0.0
        %1446 = vmatprep.subr.mxu0 0.0
        %1447 = vmatpush1.msra.mxu0 0.0
        %1448 = vmatprep.subr.mxu0 0.0
        %1449 = vmatpush1.msra.mxu0 0.0
        %1450 = vmatprep.subr.mxu0 0.0
        %1451 = vmatpush1.msra.mxu0 0.0
        %1452 = vmatprep.subr.mxu0 0.0
        %1453 = vmatpush1.msra.mxu0 0.0
        %1454 = vmatprep.subr.mxu0 0.0
        %1455 = vmatpush1.msra.mxu0 0.0
        %1456 = vmatprep.subr.mxu0 0.0
        %1457 = vmatpush1.msra.mxu0 0.0
        %1458 = vmatprep.mubr.f32.mxu0 0.0
        %1459 = vmatmul.mubr.f32.gmra.mrb[0].mxu0 %v1392
        %v1460 = vpop.f32.mrb[0].mxu0
        %v1461 = vadd.f32 %v1388, %v1460
        %v1462 = vpop.f32.mrb[0].mxu0
        %1463 = vdwg.mxu0
        %1464 = vst.msk [vmem:[%s455] sm:$0xff] %vm472, %v1461
        %s1465 = sand.u32 %s249, 1
        %s1466 = scalar_lea.sflag [#allocation4], %s1465
        %s1467 = sand.u32 %s249, 1
        %s1468 = smul.addr %s1467, 8
        %s1469 = scalar_lea.vmem [#allocation10], %s1468
        // Predicated region
        $region73: #{tpu_custom_call.1} parent=55 // pred_check
          %p1470 = pneg %p259
        $region74: #{tpu_custom_call.1} parent=55 // pred_check_branch
          %1472 = sbr.rel (%p1470) target = $region76
        $region75: #{tpu_custom_call.1} parent=55 // pred_region
          %s1474 = ssub.s32 128, 128
          %1475 = vsyncadd %s1466, %s1474
          %s1476 = smul.addr %s32, 128
          %s1477 = scalar_lea.hbm %s9, %s1476
          %s1479 = sshll.u32 %s1469, 4
          %s1480 = int_to_ptr.vmem [resolvable:$true] %s1479
          %1482 = dma.vmem_to_hbm [thread:$0]  %s1480, 128, %s1477, %s1466
        $region76: #{tpu_custom_call.1} parent=55 // pred_fallthru
          _
      $region56: #{tpu_custom_call.1} parent=5 // pred_fallthru
        _
      %p1483 = scmp.le.s32.totalorder 2, %s27
      // Predicated region
      $region77: #{tpu_custom_call.1} parent=5 // pred_check
        %p1484 = pneg %p1483
      $region78: #{tpu_custom_call.1} parent=5 // pred_check_branch
        %1486 = sbr.rel (%p1484) target = $region80
      $region79: #{tpu_custom_call.1} parent=5 // pred_region
        %s1487 = ssub.s32 %s27, 2
        // Predicated region
        $region81: #{tpu_custom_call.1} parent=79 // pred_check
          %p1488 = pneg %p265
        $region82: #{tpu_custom_call.1} parent=79 // pred_check_branch
          %1490 = sbr.rel (%p1488) target = $region84
        $region83: #{tpu_custom_call.1} parent=79 // pred_region
          %s1491 = sand.u32 %s250, 1
          %s1492 = scalar_lea.sflag [#allocation4], %s1491
          %s1493 = sand.u32 %s250, 1
          %s1494 = smul.addr %s1493, 8
          %s1495 = scalar_lea.vmem [#allocation10], %s1494
          %1496 = dma.done %s1492, 128
        $region84: #{tpu_custom_call.1} parent=79 // pred_fallthru
          _
      $region80: #{tpu_custom_call.1} parent=5 // pred_fallthru
        _
    $region6: #{tpu_custom_call.1} parent=1 // loop_footer
      %s31 = sadd.s32 1, %s27
    $region7: #{tpu_custom_call.1} parent=1 // loop_footer_branch
      %26 = sbr.rel target = $region3
    $region8: #{tpu_custom_call.1} parent=1 // loop_exit
      _
    %1497 = vsyncpa [#allocation3], 1
    %s1498 = scalar_lea.sflag [#allocation3], 1
    %1499 = vsyncpa %s1498, 1
    %1500 = vsyncpa [#allocation6], 1
    %s1501 = scalar_lea.sflag [#allocation6], 1
    %1502 = vsyncpa %s1501, 1
    %1503 = vsyncpa [#allocation9], 1
    %s1504 = scalar_lea.sflag [#allocation9], 1
    %1505 = vsyncpa %s1504, 1
    %1506 = vsyncpa [#allocation4], 1
    %s1507 = scalar_lea.sflag [#allocation4], 1
    %1508 = vsyncpa %s1507, 1

</llo_original>
